<compile_context>
chip_gen: v5e
topology: v5e:2x2
jax: 0.10.0
libtpu: 0.0.40
codegen_flags: <defaults>
</compile_context>

<pallas_src>
import jax
import jax.numpy as jnp
import numpy as np
from jax.experimental import pallas as pl
from jax.experimental import pallas as _pl_unused  # noqa: F401
from jax.experimental.pallas import tpu as pltpu   # noqa: F401  (no TPU-specific params needed at this size)

CHANNELS = 8            # `channels` in the torch module
CONV_DIMS = (32, 32)    # `conv_dims`
MLP_DIMS = (128, 128)   # `mlp_dims`
NUM_CONVS = 2           # `num_convs`

NEG_MASK_VALUE = -1e30  # large finite negative (bf16/f32 safe) instead of -inf


# ----------------------------------------------------------------------------
# Fully fused forward kernel.
# Pair ordering: flattened pair index k = j * N + i  (j = source, i = target),
# so rows [j*N, (j+1)*N) are the edge-MLP outputs of source j for every target.
# ----------------------------------------------------------------------------
def _justconvnet_kernel(x_ref, neg_mask_ref, sel_ref,
                        enc_w_ref, enc_b_ref,
                        c1_w1t_ref, c1_w1s_ref, c1_b1_ref, c1_w2_ref, c1_b2_ref,
                        c1_w3_ref, c1_b3_ref,
                        c2_w1t_ref, c2_w1s_ref, c2_b1_ref, c2_w2_ref, c2_b2_ref,
                        c2_w3_ref, c2_b3_ref,
                        m_w1_ref, m_b1_ref, m_w2_ref, m_b2_ref, m_w3_ref, m_b3_ref,
                        o_ref):
    n = x_ref.shape[0]

    def bf16_dot(a, b):
        # bf16 MXU inputs, f32 accumulation; callers keep elementwise math in f32.
        return jnp.dot(a.astype(jnp.bfloat16), b.astype(jnp.bfloat16),
                       preferred_element_type=jnp.float32)

    sel = sel_ref[...]            # [N*N, 2N] bf16 0/1: row k=j*n+i -> [one_hot(i)|one_hot(j)]
    neg_mask = neg_mask_ref[...]  # [N*N, 1] f32: 0 where edge j->i exists, -1e30 otherwise

    # Encoder: h = x @ enc_w + enc_b   (tiny, kept f32 for input-side precision) -> [N, C]
    h = jnp.dot(x_ref[...], enc_w_ref[...],
                preferred_element_type=jnp.float32) + enc_b_ref[...]

    def edge_conv(h, w1t, w1s, b1, w2, b2, w3, b3):
        # Edge-MLP layer 1 on [x_i, x_j - x_i], hoisted out of the pair domain:
        #   x_i @ w1a + (x_j - x_i) @ w1b == x_i @ (w1a - w1b) + x_j @ w1b
        a = jnp.dot(h, w1t, preferred_element_type=jnp.float32) + b1   # per target  [N, D1]
        s = jnp.dot(h, w1s, preferred_element_type=jnp.float32)        # per source  [N, D1]
        # Fused pair expansion: ONE selector matmul with contraction depth 2N  -> [N*N, D1]
        pair = bf16_dot(sel, jnp.concatenate([a, s], axis=0))
        h1 = jnp.maximum(pair, 0.0)
        h2 = jnp.maximum(bf16_dot(h1, w2) + b2, 0.0)
        # Additive mask instead of compare+select; non-edges pushed to ~-1e30.
        h3 = bf16_dot(h2, w3) + b3 + neg_mask                          # [N*N, C]
        # log2(N)-step tree max-reduction over source blocks (rows k = j*N + i).
        m = n * n
        while m > n:
            half = m // 2
            h3 = jnp.maximum(h3[:half, :], h3[half:, :])
            m = half
        return jnp.maximum(h3, 0.0)   # fused trailing F.relu from forward()

    h = edge_conv(h, c1_w1t_ref[...], c1_w1s_ref[...], c1_b1_ref[...],
                  c1_w2_ref[...], c1_b2_ref[...], c1_w3_ref[...], c1_b3_ref[...])
    h = edge_conv(h, c2_w1t_ref[...], c2_w1s_ref[...], c2_b1_ref[...],
                  c2_w2_ref[...], c2_b2_ref[...], c2_w3_ref[...], c2_b3_ref[...])

    # MLP head (fused): 8 -> 128 -> 128 -> 1; intermediates never leave VMEM.
    h = jnp.maximum(bf16_dot(h, m_w1_ref[...]) + m_b1_ref[...], 0.0)
    h = jnp.maximum(bf16_dot(h, m_w2_ref[...]) + m_b2_ref[...], 0.0)
    # NOTE: last-dim-1 output lowers to a masked store; irrelevant at 64 B, would be
    # padded/lane-densified if a batch dimension is added.
    o_ref[...] = bf16_dot(h, m_w3_ref[...]) + m_b3_ref[...]


# ----------------------------------------------------------------------------
# Wrapper: build the additive pair-layout mask + the fused 0/1 selector matrix
# and launch the single fused kernel (no grid; every operand is a full VMEM block).
# ----------------------------------------------------------------------------
def just_conv_net_forward(x_nodes, edge_index, params):
    n = x_nodes.shape[0]
    src, dst = edge_index[0], edge_index[1]          # PyG: x_j = x[src], aggregated into dst

    # Additive mask directly in pair layout k = src*n + dst : 0 for real edges, -1e30 else.
    neg_mask = jnp.full((n * n, 1), NEG_MASK_VALUE, jnp.float32).at[src * n + dst].set(0.0)

    # Constant fused pair-expansion selector (exact in bf16 since entries are 0/1):
    #   row k = j*n + i  ->  [ one_hot(i) | one_hot(j) ]
    eye = np.eye(n, dtype=np.float32)
    sel = jnp.asarray(
        np.concatenate([np.tile(eye, (n, 1)), np.repeat(eye, n, axis=0)], axis=1),
        dtype=jnp.bfloat16)

    c1, c2 = params["convs"]
    (mw1, mb1), (mw2, mb2), (mw3, mb3) = params["mlp"]

    return pl.pallas_call(
        _justconvnet_kernel,
        out_shape=jax.ShapeDtypeStruct((n, 1), jnp.float32),
    )(x_nodes, neg_mask, sel,
      params["enc_w"], params["enc_b"],
      c1["w1t"], c1["w1s"], c1["b1"], c1["w2"], c1["b2"], c1["w3"], c1["b3"],
      c2["w1t"], c2["w1s"], c2["b1"], c2["w2"], c2["b2"], c2["w3"], c2["b3"],
      mw1, mb1, mw2, mb2, mw3, mb3)


# ----------------------------------------------------------------------------
# Parameter init (deterministic, PyTorch-Linear-like uniform(-1/sqrt(fan_in))).
# Weights stored as [in, out] (torch weight transposed).
# ----------------------------------------------------------------------------
def _init_linear(key, d_in, d_out):
    kw, kb = jax.random.split(key)
    lim = 1.0 / np.sqrt(d_in)
    w = jax.random.uniform(kw, (d_in, d_out), jnp.float32, -lim, lim)
    b = jax.random.uniform(kb, (1, d_out), jnp.float32, -lim, lim)
    return w, b


def init_params(key):
    keys = jax.random.split(key, 1 + 3 * NUM_CONVS + 3)
    ki = 0
    params = {}
    params["enc_w"], params["enc_b"] = _init_linear(keys[ki], 3, CHANNELS); ki += 1
    convs = []
    for _ in range(NUM_CONVS):
        w1, b1 = _init_linear(keys[ki], 2 * CHANNELS, CONV_DIMS[0]); ki += 1
        w2, b2 = _init_linear(keys[ki], CONV_DIMS[0], CONV_DIMS[1]); ki += 1
        w3, b3 = _init_linear(keys[ki], CONV_DIMS[1], CHANNELS); ki += 1
        convs.append(dict(
            w1=w1, b1=b1,
            w1t=w1[:CHANNELS] - w1[CHANNELS:],   # acts on x_i   (hoisted split)
            w1s=w1[CHANNELS:],                   # acts on x_j
            w2=w2, b2=b2, w3=w3, b3=b3))
    params["convs"] = convs
    m1 = _init_linear(keys[ki], CHANNELS, MLP_DIMS[0]); ki += 1
    m2 = _init_linear(keys[ki], MLP_DIMS[0], MLP_DIMS[1]); ki += 1
    m3 = _init_linear(keys[ki], MLP_DIMS[1], 1); ki += 1
    params["mlp"] = [m1, m2, m3]
    return params


# Plain-JAX reference for validation (mirrors JustConvNet.forward exactly, pure f32).
def reference_forward(x_nodes, edge_index, params):
    n = x_nodes.shape[0]
    src, dst = edge_index[0], edge_index[1]
    h = x_nodes @ params["enc_w"] + params["enc_b"]
    for p in params["convs"]:
        xi, xj = h[dst], h[src]
        ef = jnp.concatenate([xi, xj - xi], axis=-1)
        m = jnp.maximum(ef @ p["w1"] + p["b1"], 0.0)
        m = jnp.maximum(m @ p["w2"] + p["b2"], 0.0)
        m = m @ p["w3"] + p["b3"]
        h = jnp.maximum(jax.ops.segment_max(m, dst, num_segments=n), 0.0)
    (w1, b1), (w2, b2), (w3, b3) = params["mlp"]
    h = jnp.maximum(h @ w1 + b1, 0.0)
    h = jnp.maximum(h @ w2 + b2, 0.0)
    return h @ w3 + b3


if __name__ == "__main__":
    key = jax.random.PRNGKey(0)
    k_param, k_x = jax.random.split(key)

    N = 16                                                    # number of graph nodes
    x_nodes = jax.random.normal(k_x, (N, 3), jnp.float32)     # data.x: 3-d positions

    # Synthetic directed graph: node i receives edges from (i+1)%N and (i+5)%N.
    ids = np.arange(N)
    src = np.concatenate([(ids + 1) % N, (ids + 5) % N])
    dst = np.concatenate([ids, ids])
    edge_index = jnp.asarray(np.stack([src, dst]), dtype=jnp.int32)   # [2, E], E = 32

    params = init_params(k_param)

    fwd = jax.jit(just_conv_net_forward)
    out = jax.block_until_ready(fwd(x_nodes, edge_index, params))

    ref = reference_forward(x_nodes, edge_index, params)
    assert out.shape == (N, 1)
    # Kernel uses bf16 MXU inputs with f32 accumulation; the f32 reference is matched to
    # within bf16 rounding accumulated over 8 matmul stages.
    assert jnp.allclose(out, ref, atol=5e-2, rtol=5e-2), "Pallas output mismatch vs reference"

    print("KERNEL_OK")
</pallas_src>

<mosaic_0001>
module attributes {stable_mosaic.version = 11 : i64} {
  func.func @_justconvnet_kernel(%arg0: memref<16x3xf32, #tpu.memory_space<vmem>>, %arg1: memref<256x1xf32, #tpu.memory_space<vmem>>, %arg2: memref<256x32xbf16, #tpu.memory_space<vmem>>, %arg3: memref<3x8xf32, #tpu.memory_space<vmem>>, %arg4: memref<1x8xf32, #tpu.memory_space<vmem>>, %arg5: memref<8x32xf32, #tpu.memory_space<vmem>>, %arg6: memref<8x32xf32, #tpu.memory_space<vmem>>, %arg7: memref<1x32xf32, #tpu.memory_space<vmem>>, %arg8: memref<32x32xf32, #tpu.memory_space<vmem>>, %arg9: memref<1x32xf32, #tpu.memory_space<vmem>>, %arg10: memref<32x8xf32, #tpu.memory_space<vmem>>, %arg11: memref<1x8xf32, #tpu.memory_space<vmem>>, %arg12: memref<8x32xf32, #tpu.memory_space<vmem>>, %arg13: memref<8x32xf32, #tpu.memory_space<vmem>>, %arg14: memref<1x32xf32, #tpu.memory_space<vmem>>, %arg15: memref<32x32xf32, #tpu.memory_space<vmem>>, %arg16: memref<1x32xf32, #tpu.memory_space<vmem>>, %arg17: memref<32x8xf32, #tpu.memory_space<vmem>>, %arg18: memref<1x8xf32, #tpu.memory_space<vmem>>, %arg19: memref<8x128xf32, #tpu.memory_space<vmem>>, %arg20: memref<1x128xf32, #tpu.memory_space<vmem>>, %arg21: memref<128x128xf32, #tpu.memory_space<vmem>>, %arg22: memref<1x128xf32, #tpu.memory_space<vmem>>, %arg23: memref<128x1xf32, #tpu.memory_space<vmem>>, %arg24: memref<1x1xf32, #tpu.memory_space<vmem>>, %arg25: memref<16x1xf32, #tpu.memory_space<vmem>>) attributes {dimension_semantics = [], scalar_prefetch = 0 : i64, scratch_operands = 0 : i64, tpu.core_type = #tpu.core_type<tc>} {
    %c0 = arith.constant 0 : index
    %c0_0 = arith.constant 0 : index
    %0 = vector.load %arg2[%c0, %c0_0] : memref<256x32xbf16, #tpu.memory_space<vmem>>, vector<256x32xbf16>
    %c0_1 = arith.constant 0 : index
    %c0_2 = arith.constant 0 : index
    %1 = vector.load %arg1[%c0_1, %c0_2] : memref<256x1xf32, #tpu.memory_space<vmem>>, vector<256x1xf32>
    %c0_3 = arith.constant 0 : index
    %c0_4 = arith.constant 0 : index
    %2 = vector.load %arg0[%c0_3, %c0_4] : memref<16x3xf32, #tpu.memory_space<vmem>>, vector<16x3xf32>
    %c0_5 = arith.constant 0 : index
    %c0_6 = arith.constant 0 : index
    %3 = vector.load %arg3[%c0_5, %c0_6] : memref<3x8xf32, #tpu.memory_space<vmem>>, vector<3x8xf32>
    %cst = arith.constant dense<0.000000e+00> : vector<16x8xf32>
    %4 = tpu.matmul %2, %3, %cst {dimension_numbers = #tpu.dot_dimension_numbers<[1], [0], [0], [1], [0, 0, 1, 1], [], []>} : vector<16x3xf32>, vector<3x8xf32>, vector<16x8xf32> -> vector<16x8xf32>
    %c0_7 = arith.constant 0 : index
    %c0_8 = arith.constant 0 : index
    %5 = vector.load %arg4[%c0_7, %c0_8] : memref<1x8xf32, #tpu.memory_space<vmem>>, vector<1x8xf32>
    %6 = vector.broadcast %5 : vector<1x8xf32> to vector<16x8xf32>
    %7 = arith.addf %4, %6 : vector<16x8xf32>
    %c0_9 = arith.constant 0 : index
    %c0_10 = arith.constant 0 : index
    %8 = vector.load %arg5[%c0_9, %c0_10] : memref<8x32xf32, #tpu.memory_space<vmem>>, vector<8x32xf32>
    %c0_11 = arith.constant 0 : index
    %c0_12 = arith.constant 0 : index
    %9 = vector.load %arg6[%c0_11, %c0_12] : memref<8x32xf32, #tpu.memory_space<vmem>>, vector<8x32xf32>
    %c0_13 = arith.constant 0 : index
    %c0_14 = arith.constant 0 : index
    %10 = vector.load %arg7[%c0_13, %c0_14] : memref<1x32xf32, #tpu.memory_space<vmem>>, vector<1x32xf32>
    %c0_15 = arith.constant 0 : index
    %c0_16 = arith.constant 0 : index
    %11 = vector.load %arg8[%c0_15, %c0_16] : memref<32x32xf32, #tpu.memory_space<vmem>>, vector<32x32xf32>
    %c0_17 = arith.constant 0 : index
    %c0_18 = arith.constant 0 : index
    %12 = vector.load %arg9[%c0_17, %c0_18] : memref<1x32xf32, #tpu.memory_space<vmem>>, vector<1x32xf32>
    %c0_19 = arith.constant 0 : index
    %c0_20 = arith.constant 0 : index
    %13 = vector.load %arg10[%c0_19, %c0_20] : memref<32x8xf32, #tpu.memory_space<vmem>>, vector<32x8xf32>
    %c0_21 = arith.constant 0 : index
    %c0_22 = arith.constant 0 : index
    %14 = vector.load %arg11[%c0_21, %c0_22] : memref<1x8xf32, #tpu.memory_space<vmem>>, vector<1x8xf32>
    %cst_23 = arith.constant dense<0.000000e+00> : vector<16x32xf32>
    %15 = tpu.matmul %7, %8, %cst_23 {dimension_numbers = #tpu.dot_dimension_numbers<[1], [0], [0], [1], [0, 0, 1, 1], [], []>} : vector<16x8xf32>, vector<8x32xf32>, vector<16x32xf32> -> vector<16x32xf32>
    %16 = vector.broadcast %10 : vector<1x32xf32> to vector<16x32xf32>
    %17 = arith.addf %15, %16 : vector<16x32xf32>
    %cst_24 = arith.constant dense<0.000000e+00> : vector<16x32xf32>
    %18 = tpu.matmul %7, %9, %cst_24 {dimension_numbers = #tpu.dot_dimension_numbers<[1], [0], [0], [1], [0, 0, 1, 1], [], []>} : vector<16x8xf32>, vector<8x32xf32>, vector<16x32xf32> -> vector<16x32xf32>
    %19 = tpu.concatenate %17, %18 in 0 : vector<16x32xf32>, vector<16x32xf32> -> vector<32x32xf32>
    %20 = arith.truncf %19 : vector<32x32xf32> to vector<32x32xbf16>
    %cst_25 = arith.constant dense<0.000000e+00> : vector<256x32xf32>
    %21 = tpu.matmul %0, %20, %cst_25 {dimension_numbers = #tpu.dot_dimension_numbers<[1], [0], [0], [1], [0, 0, 1, 1], [], []>} : vector<256x32xbf16>, vector<32x32xbf16>, vector<256x32xf32> -> vector<256x32xf32>
    %cst_26 = arith.constant 0.000000e+00 : f32
    %22 = vector.broadcast %cst_26 : f32 to vector<256x32xf32>
    %23 = arith.maximumf %21, %22 : vector<256x32xf32>
    %24 = arith.truncf %23 : vector<256x32xf32> to vector<256x32xbf16>
    %25 = arith.truncf %11 : vector<32x32xf32> to vector<32x32xbf16>
    %cst_27 = arith.constant dense<0.000000e+00> : vector<256x32xf32>
    %26 = tpu.matmul %24, %25, %cst_27 {dimension_numbers = #tpu.dot_dimension_numbers<[1], [0], [0], [1], [0, 0, 1, 1], [], []>} : vector<256x32xbf16>, vector<32x32xbf16>, vector<256x32xf32> -> vector<256x32xf32>
    %27 = vector.broadcast %12 : vector<1x32xf32> to vector<256x32xf32>
    %28 = arith.addf %26, %27 : vector<256x32xf32>
    %cst_28 = arith.constant 0.000000e+00 : f32
    %29 = vector.broadcast %cst_28 : f32 to vector<256x32xf32>
    %30 = arith.maximumf %28, %29 : vector<256x32xf32>
    %31 = arith.truncf %30 : vector<256x32xf32> to vector<256x32xbf16>
    %32 = arith.truncf %13 : vector<32x8xf32> to vector<32x8xbf16>
    %cst_29 = arith.constant dense<0.000000e+00> : vector<256x8xf32>
    %33 = tpu.matmul %31, %32, %cst_29 {dimension_numbers = #tpu.dot_dimension_numbers<[1], [0], [0], [1], [0, 0, 1, 1], [], []>} : vector<256x32xbf16>, vector<32x8xbf16>, vector<256x8xf32> -> vector<256x8xf32>
    %34 = vector.broadcast %14 : vector<1x8xf32> to vector<256x8xf32>
    %35 = arith.addf %33, %34 : vector<256x8xf32>
    %36 = vector.broadcast %1 : vector<256x1xf32> to vector<256x8xf32>
    %37 = arith.addf %35, %36 : vector<256x8xf32>
    %38 = vector.extract_strided_slice %37 {offsets = [0, 0], sizes = [128, 8], strides = [1, 1]} : vector<256x8xf32> to vector<128x8xf32>
    %39 = vector.extract_strided_slice %37 {offsets = [128, 0], sizes = [128, 8], strides = [1, 1]} : vector<256x8xf32> to vector<128x8xf32>
    %40 = arith.maximumf %38, %39 : vector<128x8xf32>
    %41 = vector.extract_strided_slice %40 {offsets = [0, 0], sizes = [64, 8], strides = [1, 1]} : vector<128x8xf32> to vector<64x8xf32>
    %42 = vector.extract_strided_slice %40 {offsets = [64, 0], sizes = [64, 8], strides = [1, 1]} : vector<128x8xf32> to vector<64x8xf32>
    %43 = arith.maximumf %41, %42 : vector<64x8xf32>
    %44 = vector.extract_strided_slice %43 {offsets = [0, 0], sizes = [32, 8], strides = [1, 1]} : vector<64x8xf32> to vector<32x8xf32>
    %45 = vector.extract_strided_slice %43 {offsets = [32, 0], sizes = [32, 8], strides = [1, 1]} : vector<64x8xf32> to vector<32x8xf32>
    %46 = arith.maximumf %44, %45 : vector<32x8xf32>
    %47 = vector.extract_strided_slice %46 {offsets = [0, 0], sizes = [16, 8], strides = [1, 1]} : vector<32x8xf32> to vector<16x8xf32>
    %48 = vector.extract_strided_slice %46 {offsets = [16, 0], sizes = [16, 8], strides = [1, 1]} : vector<32x8xf32> to vector<16x8xf32>
    %49 = arith.maximumf %47, %48 : vector<16x8xf32>
    %cst_30 = arith.constant 0.000000e+00 : f32
    %50 = vector.broadcast %cst_30 : f32 to vector<16x8xf32>
    %51 = arith.maximumf %49, %50 : vector<16x8xf32>
    %c0_31 = arith.constant 0 : index
    %c0_32 = arith.constant 0 : index
    %52 = vector.load %arg12[%c0_31, %c0_32] : memref<8x32xf32, #tpu.memory_space<vmem>>, vector<8x32xf32>
    %c0_33 = arith.constant 0 : index
    %c0_34 = arith.constant 0 : index
    %53 = vector.load %arg13[%c0_33, %c0_34] : memref<8x32xf32, #tpu.memory_space<vmem>>, vector<8x32xf32>
    %c0_35 = arith.constant 0 : index
    %c0_36 = arith.constant 0 : index
    %54 = vector.load %arg14[%c0_35, %c0_36] : memref<1x32xf32, #tpu.memory_space<vmem>>, vector<1x32xf32>
    %c0_37 = arith.constant 0 : index
    %c0_38 = arith.constant 0 : index
    %55 = vector.load %arg15[%c0_37, %c0_38] : memref<32x32xf32, #tpu.memory_space<vmem>>, vector<32x32xf32>
    %c0_39 = arith.constant 0 : index
    %c0_40 = arith.constant 0 : index
    %56 = vector.load %arg16[%c0_39, %c0_40] : memref<1x32xf32, #tpu.memory_space<vmem>>, vector<1x32xf32>
    %c0_41 = arith.constant 0 : index
    %c0_42 = arith.constant 0 : index
    %57 = vector.load %arg17[%c0_41, %c0_42] : memref<32x8xf32, #tpu.memory_space<vmem>>, vector<32x8xf32>
    %c0_43 = arith.constant 0 : index
    %c0_44 = arith.constant 0 : index
    %58 = vector.load %arg18[%c0_43, %c0_44] : memref<1x8xf32, #tpu.memory_space<vmem>>, vector<1x8xf32>
    %cst_45 = arith.constant dense<0.000000e+00> : vector<16x32xf32>
    %59 = tpu.matmul %51, %52, %cst_45 {dimension_numbers = #tpu.dot_dimension_numbers<[1], [0], [0], [1], [0, 0, 1, 1], [], []>} : vector<16x8xf32>, vector<8x32xf32>, vector<16x32xf32> -> vector<16x32xf32>
    %60 = vector.broadcast %54 : vector<1x32xf32> to vector<16x32xf32>
    %61 = arith.addf %59, %60 : vector<16x32xf32>
    %cst_46 = arith.constant dense<0.000000e+00> : vector<16x32xf32>
    %62 = tpu.matmul %51, %53, %cst_46 {dimension_numbers = #tpu.dot_dimension_numbers<[1], [0], [0], [1], [0, 0, 1, 1], [], []>} : vector<16x8xf32>, vector<8x32xf32>, vector<16x32xf32> -> vector<16x32xf32>
    %63 = tpu.concatenate %61, %62 in 0 : vector<16x32xf32>, vector<16x32xf32> -> vector<32x32xf32>
    %64 = arith.truncf %63 : vector<32x32xf32> to vector<32x32xbf16>
    %cst_47 = arith.constant dense<0.000000e+00> : vector<256x32xf32>
    %65 = tpu.matmul %0, %64, %cst_47 {dimension_numbers = #tpu.dot_dimension_numbers<[1], [0], [0], [1], [0, 0, 1, 1], [], []>} : vector<256x32xbf16>, vector<32x32xbf16>, vector<256x32xf32> -> vector<256x32xf32>
    %cst_48 = arith.constant 0.000000e+00 : f32
    %66 = vector.broadcast %cst_48 : f32 to vector<256x32xf32>
    %67 = arith.maximumf %65, %66 : vector<256x32xf32>
    %68 = arith.truncf %67 : vector<256x32xf32> to vector<256x32xbf16>
    %69 = arith.truncf %55 : vector<32x32xf32> to vector<32x32xbf16>
    %cst_49 = arith.constant dense<0.000000e+00> : vector<256x32xf32>
    %70 = tpu.matmul %68, %69, %cst_49 {dimension_numbers = #tpu.dot_dimension_numbers<[1], [0], [0], [1], [0, 0, 1, 1], [], []>} : vector<256x32xbf16>, vector<32x32xbf16>, vector<256x32xf32> -> vector<256x32xf32>
    %71 = vector.broadcast %56 : vector<1x32xf32> to vector<256x32xf32>
    %72 = arith.addf %70, %71 : vector<256x32xf32>
    %cst_50 = arith.constant 0.000000e+00 : f32
    %73 = vector.broadcast %cst_50 : f32 to vector<256x32xf32>
    %74 = arith.maximumf %72, %73 : vector<256x32xf32>
    %75 = arith.truncf %74 : vector<256x32xf32> to vector<256x32xbf16>
    %76 = arith.truncf %57 : vector<32x8xf32> to vector<32x8xbf16>
    %cst_51 = arith.constant dense<0.000000e+00> : vector<256x8xf32>
    %77 = tpu.matmul %75, %76, %cst_51 {dimension_numbers = #tpu.dot_dimension_numbers<[1], [0], [0], [1], [0, 0, 1, 1], [], []>} : vector<256x32xbf16>, vector<32x8xbf16>, vector<256x8xf32> -> vector<256x8xf32>
    %78 = vector.broadcast %58 : vector<1x8xf32> to vector<256x8xf32>
    %79 = arith.addf %77, %78 : vector<256x8xf32>
    %80 = vector.broadcast %1 : vector<256x1xf32> to vector<256x8xf32>
    %81 = arith.addf %79, %80 : vector<256x8xf32>
    %82 = vector.extract_strided_slice %81 {offsets = [0, 0], sizes = [128, 8], strides = [1, 1]} : vector<256x8xf32> to vector<128x8xf32>
    %83 = vector.extract_strided_slice %81 {offsets = [128, 0], sizes = [128, 8], strides = [1, 1]} : vector<256x8xf32> to vector<128x8xf32>
    %84 = arith.maximumf %82, %83 : vector<128x8xf32>
    %85 = vector.extract_strided_slice %84 {offsets = [0, 0], sizes = [64, 8], strides = [1, 1]} : vector<128x8xf32> to vector<64x8xf32>
    %86 = vector.extract_strided_slice %84 {offsets = [64, 0], sizes = [64, 8], strides = [1, 1]} : vector<128x8xf32> to vector<64x8xf32>
    %87 = arith.maximumf %85, %86 : vector<64x8xf32>
    %88 = vector.extract_strided_slice %87 {offsets = [0, 0], sizes = [32, 8], strides = [1, 1]} : vector<64x8xf32> to vector<32x8xf32>
    %89 = vector.extract_strided_slice %87 {offsets = [32, 0], sizes = [32, 8], strides = [1, 1]} : vector<64x8xf32> to vector<32x8xf32>
    %90 = arith.maximumf %88, %89 : vector<32x8xf32>
    %91 = vector.extract_strided_slice %90 {offsets = [0, 0], sizes = [16, 8], strides = [1, 1]} : vector<32x8xf32> to vector<16x8xf32>
    %92 = vector.extract_strided_slice %90 {offsets = [16, 0], sizes = [16, 8], strides = [1, 1]} : vector<32x8xf32> to vector<16x8xf32>
    %93 = arith.maximumf %91, %92 : vector<16x8xf32>
    %cst_52 = arith.constant 0.000000e+00 : f32
    %94 = vector.broadcast %cst_52 : f32 to vector<16x8xf32>
    %95 = arith.maximumf %93, %94 : vector<16x8xf32>
    %c0_53 = arith.constant 0 : index
    %c0_54 = arith.constant 0 : index
    %96 = vector.load %arg19[%c0_53, %c0_54] : memref<8x128xf32, #tpu.memory_space<vmem>>, vector<8x128xf32>
    %97 = arith.truncf %95 : vector<16x8xf32> to vector<16x8xbf16>
    %98 = arith.truncf %96 : vector<8x128xf32> to vector<8x128xbf16>
    %cst_55 = arith.constant dense<0.000000e+00> : vector<16x128xf32>
    %99 = tpu.matmul %97, %98, %cst_55 {dimension_numbers = #tpu.dot_dimension_numbers<[1], [0], [0], [1], [0, 0, 1, 1], [], []>} : vector<16x8xbf16>, vector<8x128xbf16>, vector<16x128xf32> -> vector<16x128xf32>
    %c0_56 = arith.constant 0 : index
    %c0_57 = arith.constant 0 : index
    %100 = vector.load %arg20[%c0_56, %c0_57] : memref<1x128xf32, #tpu.memory_space<vmem>>, vector<1x128xf32>
    %101 = vector.broadcast %100 : vector<1x128xf32> to vector<16x128xf32>
    %102 = arith.addf %99, %101 : vector<16x128xf32>
    %cst_58 = arith.constant 0.000000e+00 : f32
    %103 = vector.broadcast %cst_58 : f32 to vector<16x128xf32>
    %104 = arith.maximumf %102, %103 : vector<16x128xf32>
    %c0_59 = arith.constant 0 : index
    %c0_60 = arith.constant 0 : index
    %105 = vector.load %arg21[%c0_59, %c0_60] : memref<128x128xf32, #tpu.memory_space<vmem>>, vector<128x128xf32>
    %106 = arith.truncf %104 : vector<16x128xf32> to vector<16x128xbf16>
    %107 = arith.truncf %105 : vector<128x128xf32> to vector<128x128xbf16>
    %cst_61 = arith.constant dense<0.000000e+00> : vector<16x128xf32>
    %108 = tpu.matmul %106, %107, %cst_61 {dimension_numbers = #tpu.dot_dimension_numbers<[1], [0], [0], [1], [0, 0, 1, 1], [], []>} : vector<16x128xbf16>, vector<128x128xbf16>, vector<16x128xf32> -> vector<16x128xf32>
    %c0_62 = arith.constant 0 : index
    %c0_63 = arith.constant 0 : index
    %109 = vector.load %arg22[%c0_62, %c0_63] : memref<1x128xf32, #tpu.memory_space<vmem>>, vector<1x128xf32>
    %110 = vector.broadcast %109 : vector<1x128xf32> to vector<16x128xf32>
    %111 = arith.addf %108, %110 : vector<16x128xf32>
    %cst_64 = arith.constant 0.000000e+00 : f32
    %112 = vector.broadcast %cst_64 : f32 to vector<16x128xf32>
    %113 = arith.maximumf %111, %112 : vector<16x128xf32>
    %c0_65 = arith.constant 0 : index
    %c0_66 = arith.constant 0 : index
    %114 = vector.load %arg23[%c0_65, %c0_66] : memref<128x1xf32, #tpu.memory_space<vmem>>, vector<128x1xf32>
    %115 = arith.truncf %113 : vector<16x128xf32> to vector<16x128xbf16>
    %116 = arith.truncf %114 : vector<128x1xf32> to vector<128x1xbf16>
    %cst_67 = arith.constant dense<0.000000e+00> : vector<16x1xf32>
    %117 = tpu.matmul %115, %116, %cst_67 {dimension_numbers = #tpu.dot_dimension_numbers<[1], [0], [0], [1], [0, 0, 1, 1], [], []>} : vector<16x128xbf16>, vector<128x1xbf16>, vector<16x1xf32> -> vector<16x1xf32>
    %c0_68 = arith.constant 0 : index
    %c0_69 = arith.constant 0 : index
    %118 = vector.load %arg24[%c0_68, %c0_69] : memref<1x1xf32, #tpu.memory_space<vmem>>, vector<1x1xf32>
    %119 = vector.broadcast %118 : vector<1x1xf32> to vector<16x1xf32>
    %120 = arith.addf %117, %119 : vector<16x1xf32>
    %c0_70 = arith.constant 0 : index
    %c0_71 = arith.constant 0 : index
    %121 = vector.load %arg25[%c0_70, %c0_71] : memref<16x1xf32, #tpu.memory_space<vmem>>, vector<16x1xf32>
    tpu.vector_store %arg25[%c0_70, %c0_71], %120 {strides = array<i32>} : memref<16x1xf32, #tpu.memory_space<vmem>>, vector<16x1xf32>,
    return
  }
}

</mosaic_0001>

<llo_original>
// kernel: just_conv_net_forward.1
$region0: #{just_conv_net_forward.1}
  #allocation0 [shape = 'u32[]', space=smem, size = 0x4, offset = 0x4, fixed_abs, tag = 'smem constant byte address 0x4 - core index']
  #allocation1 [shape = 'u32[72,128]{1,0:T(1,128)}', space=vmem, size = 0x9000, scoped, tag = 'internal scratch']
  #allocation2 [shape = 'f32[1,1]{1,0:T(1,128)S(1)}', space=vmem, size = 0x200, scoped, tag = 'scoped memory for just_conv_net_forward.1']
  %s0 = inlined_call_operand.vmem [shape: f32[16,3], index: 0, kind: input, shape index: {}]
  %s1 = inlined_call_operand.vmem [shape: f32[256,1], index: 1, kind: input, shape index: {}]
  %s2 = inlined_call_operand.vmem [shape: bf16[256,32], index: 2, kind: input, shape index: {}]
  %s3 = inlined_call_operand.vmem [shape: f32[3,8], index: 3, kind: input, shape index: {}]
  %s4 = inlined_call_operand.vmem [shape: f32[1,8], index: 4, kind: input, shape index: {}]
  %s5 = inlined_call_operand.vmem [shape: f32[8,32], index: 5, kind: input, shape index: {}]
  %s6 = inlined_call_operand.vmem [shape: f32[8,32], index: 6, kind: input, shape index: {}]
  %s7 = inlined_call_operand.vmem [shape: f32[1,32], index: 7, kind: input, shape index: {}]
  %s8 = inlined_call_operand.vmem [shape: f32[32,32], index: 8, kind: input, shape index: {}]
  %s9 = inlined_call_operand.vmem [shape: f32[1,32], index: 9, kind: input, shape index: {}]
  %s10 = inlined_call_operand.vmem [shape: f32[32,8], index: 10, kind: input, shape index: {}]
  %s11 = inlined_call_operand.vmem [shape: f32[1,8], index: 11, kind: input, shape index: {}]
  %s12 = inlined_call_operand.vmem [shape: f32[8,32], index: 12, kind: input, shape index: {}]
  %s13 = inlined_call_operand.vmem [shape: f32[8,32], index: 13, kind: input, shape index: {}]
  %s14 = inlined_call_operand.vmem [shape: f32[1,32], index: 14, kind: input, shape index: {}]
  %s15 = inlined_call_operand.vmem [shape: f32[32,32], index: 15, kind: input, shape index: {}]
  %s16 = inlined_call_operand.vmem [shape: f32[1,32], index: 16, kind: input, shape index: {}]
  %s17 = inlined_call_operand.vmem [shape: f32[32,8], index: 17, kind: input, shape index: {}]
  %s18 = inlined_call_operand.vmem [shape: f32[1,8], index: 18, kind: input, shape index: {}]
  %s19 = inlined_call_operand.vmem [shape: f32[8,128], index: 19, kind: input, shape index: {}]
  %s20 = inlined_call_operand.vmem [shape: f32[1,128], index: 20, kind: input, shape index: {}]
  %s21 = inlined_call_operand.vmem [shape: f32[128,128], index: 21, kind: input, shape index: {}]
  %s22 = inlined_call_operand.vmem [shape: f32[1,128], index: 22, kind: input, shape index: {}]
  %s23 = inlined_call_operand.vmem [shape: f32[128,1], index: 23, kind: input, shape index: {}]
  %s24 = inlined_call_operand.<no memory space> [shape: f32[1,1], index: 24, kind: input, shape index: {}]
  %s25 = inlined_call_operand.vmem [shape: f32[16,1], index: 25, kind: output, shape index: {}]
  %s26 = sld [smem:[#allocation0]]
  $region110: #{just_conv_net_forward.1} parent=0
    _
  %s28 = ssub.s32 1, %s26
  %s29 = scalar_select 0, %s28, %s26
  %v30 = vstv %s24
  %31 = vst [vmem:[#allocation2] sm:$0x1] %v30
  // Predicated region
  $region2: #{just_conv_net_forward.1} parent=0 // pred_check
    _
  $region3: #{just_conv_net_forward.1} parent=0 // pred_check_branch
    %33 = sbr.rel (0) target = $region5
  $region4: #{just_conv_net_forward.1} parent=0 // pred_region
    _
  $region5: #{just_conv_net_forward.1} parent=0 // pred_fallthru
    _
  // Predicated region
  $region6: #{just_conv_net_forward.1} parent=0 // pred_check
    _
  $region7: #{just_conv_net_forward.1} parent=0 // pred_check_branch
    %35 = sbr.rel (0) target = $region9
  $region8: #{just_conv_net_forward.1} parent=0 // pred_region
    _
  $region9: #{just_conv_net_forward.1} parent=0 // pred_fallthru
    _
  // Predicated region
  $region10: #{just_conv_net_forward.1} parent=0 // pred_check
    _
  $region11: #{just_conv_net_forward.1} parent=0 // pred_check_branch
    %37 = sbr.rel (0) target = $region13
  $region12: #{just_conv_net_forward.1} parent=0 // pred_region
    _
  $region13: #{just_conv_net_forward.1} parent=0 // pred_fallthru
    _
  // Predicated region
  $region14: #{just_conv_net_forward.1} parent=0 // pred_check
    _
  $region15: #{just_conv_net_forward.1} parent=0 // pred_check_branch
    %39 = sbr.rel (0) target = $region17
  $region16: #{just_conv_net_forward.1} parent=0 // pred_region
    _
  $region17: #{just_conv_net_forward.1} parent=0 // pred_fallthru
    _
  // Predicated region
  $region18: #{just_conv_net_forward.1} parent=0 // pred_check
    _
  $region19: #{just_conv_net_forward.1} parent=0 // pred_check_branch
    %41 = sbr.rel (0) target = $region21
  $region20: #{just_conv_net_forward.1} parent=0 // pred_region
    _
  $region21: #{just_conv_net_forward.1} parent=0 // pred_fallthru
    _
  // Predicated region
  $region22: #{just_conv_net_forward.1} parent=0 // pred_check
    _
  $region23: #{just_conv_net_forward.1} parent=0 // pred_check_branch
    %43 = sbr.rel (0) target = $region25
  $region24: #{just_conv_net_forward.1} parent=0 // pred_region
    _
  $region25: #{just_conv_net_forward.1} parent=0 // pred_fallthru
    _
  // Predicated region
  $region26: #{just_conv_net_forward.1} parent=0 // pred_check
    _
  $region27: #{just_conv_net_forward.1} parent=0 // pred_check_branch
    %45 = sbr.rel (0) target = $region29
  $region28: #{just_conv_net_forward.1} parent=0 // pred_region
    _
  $region29: #{just_conv_net_forward.1} parent=0 // pred_fallthru
    _
  // Predicated region
  $region30: #{just_conv_net_forward.1} parent=0 // pred_check
    _
  $region31: #{just_conv_net_forward.1} parent=0 // pred_check_branch
    %47 = sbr.rel (0) target = $region33
  $region32: #{just_conv_net_forward.1} parent=0 // pred_region
    _
  $region33: #{just_conv_net_forward.1} parent=0 // pred_fallthru
    _
  // Predicated region
  $region34: #{just_conv_net_forward.1} parent=0 // pred_check
    _
  $region35: #{just_conv_net_forward.1} parent=0 // pred_check_branch
    %49 = sbr.rel (0) target = $region37
  $region36: #{just_conv_net_forward.1} parent=0 // pred_region
    _
  $region37: #{just_conv_net_forward.1} parent=0 // pred_fallthru
    _
  // Predicated region
  $region38: #{just_conv_net_forward.1} parent=0 // pred_check
    _
  $region39: #{just_conv_net_forward.1} parent=0 // pred_check_branch
    %51 = sbr.rel (0) target = $region41
  $region40: #{just_conv_net_forward.1} parent=0 // pred_region
    _
  $region41: #{just_conv_net_forward.1} parent=0 // pred_fallthru
    _
  // Predicated region
  $region42: #{just_conv_net_forward.1} parent=0 // pred_check
    _
  $region43: #{just_conv_net_forward.1} parent=0 // pred_check_branch
    %53 = sbr.rel (0) target = $region45
  $region44: #{just_conv_net_forward.1} parent=0 // pred_region
    _
  $region45: #{just_conv_net_forward.1} parent=0 // pred_fallthru
    _
  // Predicated region
  $region46: #{just_conv_net_forward.1} parent=0 // pred_check
    _
  $region47: #{just_conv_net_forward.1} parent=0 // pred_check_branch
    %55 = sbr.rel (0) target = $region49
  $region48: #{just_conv_net_forward.1} parent=0 // pred_region
    _
  $region49: #{just_conv_net_forward.1} parent=0 // pred_fallthru
    _
  // Predicated region
  $region50: #{just_conv_net_forward.1} parent=0 // pred_check
    _
  $region51: #{just_conv_net_forward.1} parent=0 // pred_check_branch
    %57 = sbr.rel (0) target = $region53
  $region52: #{just_conv_net_forward.1} parent=0 // pred_region
    _
  $region53: #{just_conv_net_forward.1} parent=0 // pred_fallthru
    _
  // Predicated region
  $region54: #{just_conv_net_forward.1} parent=0 // pred_check
    _
  $region55: #{just_conv_net_forward.1} parent=0 // pred_check_branch
    %59 = sbr.rel (0) target = $region57
  $region56: #{just_conv_net_forward.1} parent=0 // pred_region
    _
  $region57: #{just_conv_net_forward.1} parent=0 // pred_fallthru
    _
  // Predicated region
  $region58: #{just_conv_net_forward.1} parent=0 // pred_check
    _
  $region59: #{just_conv_net_forward.1} parent=0 // pred_check_branch
    %61 = sbr.rel (0) target = $region61
  $region60: #{just_conv_net_forward.1} parent=0 // pred_region
    _
  $region61: #{just_conv_net_forward.1} parent=0 // pred_fallthru
    _
  // Predicated region
  $region62: #{just_conv_net_forward.1} parent=0 // pred_check
    _
  $region63: #{just_conv_net_forward.1} parent=0 // pred_check_branch
    %63 = sbr.rel (0) target = $region65
  $region64: #{just_conv_net_forward.1} parent=0 // pred_region
    _
  $region65: #{just_conv_net_forward.1} parent=0 // pred_fallthru
    _
  // Predicated region
  $region66: #{just_conv_net_forward.1} parent=0 // pred_check
    _
  $region67: #{just_conv_net_forward.1} parent=0 // pred_check_branch
    %65 = sbr.rel (0) target = $region69
  $region68: #{just_conv_net_forward.1} parent=0 // pred_region
    _
  $region69: #{just_conv_net_forward.1} parent=0 // pred_fallthru
    _
  // Predicated region
  $region70: #{just_conv_net_forward.1} parent=0 // pred_check
    _
  $region71: #{just_conv_net_forward.1} parent=0 // pred_check_branch
    %67 = sbr.rel (0) target = $region73
  $region72: #{just_conv_net_forward.1} parent=0 // pred_region
    _
  $region73: #{just_conv_net_forward.1} parent=0 // pred_fallthru
    _
  // Predicated region
  $region74: #{just_conv_net_forward.1} parent=0 // pred_check
    _
  $region75: #{just_conv_net_forward.1} parent=0 // pred_check_branch
    %69 = sbr.rel (0) target = $region77
  $region76: #{just_conv_net_forward.1} parent=0 // pred_region
    _
  $region77: #{just_conv_net_forward.1} parent=0 // pred_fallthru
    _
  // Predicated region
  $region78: #{just_conv_net_forward.1} parent=0 // pred_check
    _
  $region79: #{just_conv_net_forward.1} parent=0 // pred_check_branch
    %71 = sbr.rel (0) target = $region81
  $region80: #{just_conv_net_forward.1} parent=0 // pred_region
    _
  $region81: #{just_conv_net_forward.1} parent=0 // pred_fallthru
    _
  // Predicated region
  $region82: #{just_conv_net_forward.1} parent=0 // pred_check
    _
  $region83: #{just_conv_net_forward.1} parent=0 // pred_check_branch
    %73 = sbr.rel (0) target = $region85
  $region84: #{just_conv_net_forward.1} parent=0 // pred_region
    _
  $region85: #{just_conv_net_forward.1} parent=0 // pred_fallthru
    _
  // Predicated region
  $region86: #{just_conv_net_forward.1} parent=0 // pred_check
    _
  $region87: #{just_conv_net_forward.1} parent=0 // pred_check_branch
    %75 = sbr.rel (0) target = $region89
  $region88: #{just_conv_net_forward.1} parent=0 // pred_region
    _
  $region89: #{just_conv_net_forward.1} parent=0 // pred_fallthru
    _
  // Predicated region
  $region90: #{just_conv_net_forward.1} parent=0 // pred_check
    _
  $region91: #{just_conv_net_forward.1} parent=0 // pred_check_branch
    %77 = sbr.rel (0) target = $region93
  $region92: #{just_conv_net_forward.1} parent=0 // pred_region
    _
  $region93: #{just_conv_net_forward.1} parent=0 // pred_fallthru
    _
  // Predicated region
  $region94: #{just_conv_net_forward.1} parent=0 // pred_check
    _
  $region95: #{just_conv_net_forward.1} parent=0 // pred_check_branch
    %79 = sbr.rel (0) target = $region97
  $region96: #{just_conv_net_forward.1} parent=0 // pred_region
    _
  $region97: #{just_conv_net_forward.1} parent=0 // pred_fallthru
    _
  // Predicated region
  $region98: #{just_conv_net_forward.1} parent=0 // pred_check
    _
  $region99: #{just_conv_net_forward.1} parent=0 // pred_check_branch
    %81 = sbr.rel (0) target = $region101
  $region100: #{just_conv_net_forward.1} parent=0 // pred_region
    _
  $region101: #{just_conv_net_forward.1} parent=0 // pred_fallthru
    _
  %v83 = vld [vmem:[%s2] sm:$0xf]
  %v84 = vld [vmem:[%s2 + $0x4] sm:$0xf]
  %v85 = vld [vmem:[%s2 + $0x8] sm:$0xf]
  %v86 = vld [vmem:[%s2 + $0xc] sm:$0xf]
  %v87 = vld [vmem:[%s2 + $0x10] sm:$0xf]
  %v88 = vld [vmem:[%s2 + $0x14] sm:$0xf]
  %v89 = vld [vmem:[%s2 + $0x18] sm:$0xf]
  %v90 = vld [vmem:[%s2 + $0x1c] sm:$0xf]
  %v91 = vld [vmem:[%s2 + $0x20] sm:$0xf]
  %v92 = vld [vmem:[%s2 + $0x24] sm:$0xf]
  %v93 = vld [vmem:[%s2 + $0x28] sm:$0xf]
  %v94 = vld [vmem:[%s2 + $0x2c] sm:$0xf]
  %v95 = vld [vmem:[%s2 + $0x30] sm:$0xf]
  %v96 = vld [vmem:[%s2 + $0x34] sm:$0xf]
  %v97 = vld [vmem:[%s2 + $0x38] sm:$0xf]
  %v98 = vld [vmem:[%s2 + $0x3c] sm:$0xf]
  %v99 = vld [vmem:[%s2 + $0x40] sm:$0xf]
  %v100 = vld [vmem:[%s2 + $0x44] sm:$0xf]
  %v101 = vld [vmem:[%s2 + $0x48] sm:$0xf]
  %v102 = vld [vmem:[%s2 + $0x4c] sm:$0xf]
  %v103 = vld [vmem:[%s2 + $0x50] sm:$0xf]
  %v104 = vld [vmem:[%s2 + $0x54] sm:$0xf]
  %v105 = vld [vmem:[%s2 + $0x58] sm:$0xf]
  %v106 = vld [vmem:[%s2 + $0x5c] sm:$0xf]
  %v107 = vld [vmem:[%s2 + $0x60] sm:$0xf]
  %v108 = vld [vmem:[%s2 + $0x64] sm:$0xf]
  %v109 = vld [vmem:[%s2 + $0x68] sm:$0xf]
  %v110 = vld [vmem:[%s2 + $0x6c] sm:$0xf]
  %v111 = vld [vmem:[%s2 + $0x70] sm:$0xf]
  %v112 = vld [vmem:[%s2 + $0x74] sm:$0xf]
  %v113 = vld [vmem:[%s2 + $0x78] sm:$0xf]
  %v114 = vld [vmem:[%s2 + $0x7c] sm:$0xf]
  %v115 = vld [vmem:[%s1] sm:$0xff]
  %v116 = vld [vmem:[%s1 + $0x8] sm:$0xff]
  %v117 = vld [vmem:[%s1 + $0x10] sm:$0xff]
  %v118 = vld [vmem:[%s1 + $0x18] sm:$0xff]
  %v119 = vld [vmem:[%s1 + $0x20] sm:$0xff]
  %v120 = vld [vmem:[%s1 + $0x28] sm:$0xff]
  %v121 = vld [vmem:[%s1 + $0x30] sm:$0xff]
  %v122 = vld [vmem:[%s1 + $0x38] sm:$0xff]
  %v123 = vld [vmem:[%s1 + $0x40] sm:$0xff]
  %v124 = vld [vmem:[%s1 + $0x48] sm:$0xff]
  %v125 = vld [vmem:[%s1 + $0x50] sm:$0xff]
  %v126 = vld [vmem:[%s1 + $0x58] sm:$0xff]
  %v127 = vld [vmem:[%s1 + $0x60] sm:$0xff]
  %v128 = vld [vmem:[%s1 + $0x68] sm:$0xff]
  %v129 = vld [vmem:[%s1 + $0x70] sm:$0xff]
  %v130 = vld [vmem:[%s1 + $0x78] sm:$0xff]
  %v131 = vld [vmem:[%s1 + $0x80] sm:$0xff]
  %v132 = vld [vmem:[%s1 + $0x88] sm:$0xff]
  %v133 = vld [vmem:[%s1 + $0x90] sm:$0xff]
  %v134 = vld [vmem:[%s1 + $0x98] sm:$0xff]
  %v135 = vld [vmem:[%s1 + $0xa0] sm:$0xff]
  %v136 = vld [vmem:[%s1 + $0xa8] sm:$0xff]
  %v137 = vld [vmem:[%s1 + $0xb0] sm:$0xff]
  %v138 = vld [vmem:[%s1 + $0xb8] sm:$0xff]
  %v139 = vld [vmem:[%s1 + $0xc0] sm:$0xff]
  %v140 = vld [vmem:[%s1 + $0xc8] sm:$0xff]
  %v141 = vld [vmem:[%s1 + $0xd0] sm:$0xff]
  %v142 = vld [vmem:[%s1 + $0xd8] sm:$0xff]
  %v143 = vld [vmem:[%s1 + $0xe0] sm:$0xff]
  %v144 = vld [vmem:[%s1 + $0xe8] sm:$0xff]
  %v145 = vld [vmem:[%s1 + $0xf0] sm:$0xff]
  %v146 = vld [vmem:[%s1 + $0xf8] sm:$0xff]
  %v147 = vld [vmem:[%s0] sm:$0xff]
  %v148 = vld [vmem:[%s0 + $0x8] sm:$0xff]
  %v149 = vld [vmem:[%s3] sm:$0x7]
  %v150 = vld [vmem:[%s4] sm:$0x1]
  %v152 = vperm.slane %v150, 0
  %vm154 = vcmask 23552
  %v156 = vsel %vm154, %v147, 0
  %v159 = vsel %vm154, %v148, 0
  %vm161 = vcmask 1042432
  %v163 = vsel %vm161, %v149, 0
  %165 = vmatpush.msra.mxu0 0.0
  %166 = vmatpush.msra.mxu0 0.0
  %167 = vmatpush.msra.mxu0 0.0
  %168 = vmatpush.msra.mxu0 0.0
  %169 = vmatpush.msra.mxu0 0.0
  %170 = vmatpush.msra.mxu0 0.0
  %171 = vmatpush.msra.mxu0 0.0
  %172 = vmatpush.msra.mxu0 0.0
  %173 = vmatpush.msra.mxu0 0.0
  %174 = vmatpush.msra.mxu0 0.0
  %175 = vmatpush.msra.mxu0 0.0
  %176 = vmatpush.msra.mxu0 0.0
  %177 = vmatpush.msra.mxu0 0.0
  %178 = vmatpush.msra.mxu0 0.0
  %179 = vmatpush.msra.mxu0 0.0
  %180 = vmatpush.msra.mxu0 %v163
  %181 = vmatmul.f32.gmra.mxu0 %v156
  %v182 = vpop.f32.mrf.mxu0
  %v183 = vadd.f32 %v152, %v182
  %184 = vmatmul.f32.gmra.mxu0 %v159
  %v185 = vpop.f32.mrf.mxu0
  %v186 = vadd.f32 %v152, %v185
  %187 = vdwg.mxu0
  %v188 = vld [vmem:[%s5] sm:$0xff]
  %v189 = vld [vmem:[%s6] sm:$0xff]
  %v190 = vld [vmem:[%s7] sm:$0x1]
  %v191 = vld [vmem:[%s8] sm:$0xff]
  %v192 = vld [vmem:[%s8 + $0x8] sm:$0xff]
  %v193 = vld [vmem:[%s8 + $0x10] sm:$0xff]
  %v194 = vld [vmem:[%s8 + $0x18] sm:$0xff]
  %v195 = vld [vmem:[%s9] sm:$0x1]
  %v196 = vld [vmem:[%s10] sm:$0xff]
  %v197 = vld [vmem:[%s10 + $0x8] sm:$0xff]
  %v198 = vld [vmem:[%s10 + $0x10] sm:$0xff]
  %v199 = vld [vmem:[%s10 + $0x18] sm:$0xff]
  %v200 = vld [vmem:[%s11] sm:$0x1]
  %v202 = vperm.slane %v190, 0
  %vm204 = vcmask 64512
  %v206 = vsel %vm204, %v183, 0
  %v209 = vsel %vm204, %v186, 0
  %211 = vmatpush.msra.mxu0 0.0
  %212 = vmatpush.msra.mxu0 0.0
  %213 = vmatpush.msra.mxu0 0.0
  %214 = vmatpush.msra.mxu0 0.0
  %215 = vmatpush.msra.mxu0 0.0
  %216 = vmatpush.msra.mxu0 0.0
  %217 = vmatpush.msra.mxu0 0.0
  %218 = vmatpush.msra.mxu0 0.0
  %219 = vmatpush.msra.mxu0 0.0
  %220 = vmatpush.msra.mxu0 0.0
  %221 = vmatpush.msra.mxu0 0.0
  %222 = vmatpush.msra.mxu0 0.0
  %223 = vmatpush.msra.mxu0 0.0
  %224 = vmatpush.msra.mxu0 0.0
  %225 = vmatpush.msra.mxu0 0.0
  %226 = vmatpush.msra.mxu0 %v188
  %227 = vmatmul.f32.gmra.mxu0 %v206
  %v228 = vpop.f32.mrf.mxu0
  %v229 = vadd.f32 %v202, %v228
  %230 = vmatmul.f32.gmra.mxu0 %v209
  %v231 = vpop.f32.mrf.mxu0
  %v232 = vadd.f32 %v202, %v231
  %233 = vdwg.mxu0
  %234 = vmatpush.msra.mxu0 0.0
  %235 = vmatpush.msra.mxu0 0.0
  %236 = vmatpush.msra.mxu0 0.0
  %237 = vmatpush.msra.mxu0 0.0
  %238 = vmatpush.msra.mxu0 0.0
  %239 = vmatpush.msra.mxu0 0.0
  %240 = vmatpush.msra.mxu0 0.0
  %241 = vmatpush.msra.mxu0 0.0
  %242 = vmatpush.msra.mxu0 0.0
  %243 = vmatpush.msra.mxu0 0.0
  %244 = vmatpush.msra.mxu0 0.0
  %245 = vmatpush.msra.mxu0 0.0
  %246 = vmatpush.msra.mxu0 0.0
  %247 = vmatpush.msra.mxu0 0.0
  %248 = vmatpush.msra.mxu0 0.0
  %249 = vmatpush.msra.mxu0 %v189
  %250 = vmatmul.f32.gmra.mxu0 %v206
  %v251 = vpop.f32.mrf.mxu0
  %v252 = vadd.f32 0.0, %v251
  %253 = vmatmul.f32.gmra.mxu0 %v209
  %v254 = vpop.f32.mrf.mxu0
  %v255 = vadd.f32 0.0, %v254
  %256 = vdwg.mxu0
  %v257 = vpack.c.bf16 %v232, %v229
  %v258 = vpack.c.bf16 %v255, %v252
  %v291 = vunpack.c.l.b16 %v83
  %v292 = vunpack.c.l.b16 %v84
  %v293 = vunpack.c.l.b16 %v85
  %v294 = vunpack.c.l.b16 %v86
  %v295 = vunpack.c.l.b16 %v87
  %v296 = vunpack.c.l.b16 %v88
  %v297 = vunpack.c.l.b16 %v89
  %v298 = vunpack.c.l.b16 %v90
  %v299 = vunpack.c.l.b16 %v91
  %v300 = vunpack.c.l.b16 %v92
  %v301 = vunpack.c.l.b16 %v93
  %v302 = vunpack.c.l.b16 %v94
  %v303 = vunpack.c.l.b16 %v95
  %v304 = vunpack.c.l.b16 %v96
  %v305 = vunpack.c.l.b16 %v97
  %v306 = vunpack.c.l.b16 %v98
  %v307 = vunpack.c.l.b16 %v99
  %v308 = vunpack.c.l.b16 %v100
  %v309 = vunpack.c.l.b16 %v101
  %v310 = vunpack.c.l.b16 %v102
  %v311 = vunpack.c.l.b16 %v103
  %v312 = vunpack.c.l.b16 %v104
  %v313 = vunpack.c.l.b16 %v105
  %v314 = vunpack.c.l.b16 %v106
  %v315 = vunpack.c.l.b16 %v107
  %v316 = vunpack.c.l.b16 %v108
  %v317 = vunpack.c.l.b16 %v109
  %v318 = vunpack.c.l.b16 %v110
  %v319 = vunpack.c.l.b16 %v111
  %v320 = vunpack.c.l.b16 %v112
  %v321 = vunpack.c.l.b16 %v113
  %v322 = vunpack.c.l.b16 %v114
  %v323 = vpack.c.b16 %v292, %v291
  %v324 = vpack.c.b16 %v294, %v293
  %v325 = vpack.c.b16 %v296, %v295
  %v326 = vpack.c.b16 %v298, %v297
  %v327 = vpack.c.b16 %v300, %v299
  %v328 = vpack.c.b16 %v302, %v301
  %v329 = vpack.c.b16 %v304, %v303
  %v330 = vpack.c.b16 %v306, %v305
  %v331 = vpack.c.b16 %v308, %v307
  %v332 = vpack.c.b16 %v310, %v309
  %v333 = vpack.c.b16 %v312, %v311
  %v334 = vpack.c.b16 %v314, %v313
  %v335 = vpack.c.b16 %v316, %v315
  %v336 = vpack.c.b16 %v318, %v317
  %v337 = vpack.c.b16 %v320, %v319
  %v338 = vpack.c.b16 %v322, %v321
  %vm339 = vcmask 261120
  %v341 = vsel %vm339, %v323, 0
  %v344 = vsel %vm339, %v324, 0
  %v347 = vsel %vm339, %v325, 0
  %v350 = vsel %vm339, %v326, 0
  %v353 = vsel %vm339, %v327, 0
  %v356 = vsel %vm339, %v328, 0
  %v359 = vsel %vm339, %v329, 0
  %v362 = vsel %vm339, %v330, 0
  %v365 = vsel %vm339, %v331, 0
  %v368 = vsel %vm339, %v332, 0
  %v371 = vsel %vm339, %v333, 0
  %v374 = vsel %vm339, %v334, 0
  %v377 = vsel %vm339, %v335, 0
  %v380 = vsel %vm339, %v336, 0
  %v383 = vsel %vm339, %v337, 0
  %v386 = vsel %vm339, %v338, 0
  %388 = vmatpush.bf16.msra.mxu0 0
  %389 = vmatpush.bf16.msra.mxu0 0
  %390 = vmatpush.bf16.msra.mxu0 0
  %391 = vmatpush.bf16.msra.mxu0 0
  %392 = vmatpush.bf16.msra.mxu0 0
  %393 = vmatpush.bf16.msra.mxu0 0
  %394 = vmatpush.bf16.msra.mxu0 %v258
  %395 = vmatpush.bf16.msra.mxu0 %v257
  %396 = vmatmul.bf16.gmra.mxu0 %v341
  %v397 = vpop.f32.mrf.mxu0
  %v398 = vadd.f32 0.0, %v397
  %v399 = vpop.f32.mrf.mxu0
  %v400 = vadd.f32 0.0, %v399
  %401 = vmatmul.bf16.gmra.mxu0 %v344
  %v402 = vpop.f32.mrf.mxu0
  %v403 = vadd.f32 0.0, %v402
  %v404 = vpop.f32.mrf.mxu0
  %v405 = vadd.f32 0.0, %v404
  %406 = vmatmul.bf16.gmra.mxu0 %v347
  %v407 = vpop.f32.mrf.mxu0
  %v408 = vadd.f32 0.0, %v407
  %v409 = vpop.f32.mrf.mxu0
  %v410 = vadd.f32 0.0, %v409
  %411 = vmatmul.bf16.gmra.mxu0 %v350
  %v412 = vpop.f32.mrf.mxu0
  %v413 = vadd.f32 0.0, %v412
  %v414 = vpop.f32.mrf.mxu0
  %v415 = vadd.f32 0.0, %v414
  %416 = vmatmul.bf16.gmra.mxu0 %v353
  %v417 = vpop.f32.mrf.mxu0
  %v418 = vadd.f32 0.0, %v417
  %v419 = vpop.f32.mrf.mxu0
  %v420 = vadd.f32 0.0, %v419
  %421 = vmatmul.bf16.gmra.mxu0 %v356
  %v422 = vpop.f32.mrf.mxu0
  %v423 = vadd.f32 0.0, %v422
  %v424 = vpop.f32.mrf.mxu0
  %v425 = vadd.f32 0.0, %v424
  %426 = vmatmul.bf16.gmra.mxu0 %v359
  %v427 = vpop.f32.mrf.mxu0
  %v428 = vadd.f32 0.0, %v427
  %v429 = vpop.f32.mrf.mxu0
  %v430 = vadd.f32 0.0, %v429
  %431 = vmatmul.bf16.gmra.mxu0 %v362
  %v432 = vpop.f32.mrf.mxu0
  %v433 = vadd.f32 0.0, %v432
  %v434 = vpop.f32.mrf.mxu0
  %v435 = vadd.f32 0.0, %v434
  %436 = vmatmul.bf16.gmra.mxu0 %v365
  %v437 = vpop.f32.mrf.mxu0
  %v438 = vadd.f32 0.0, %v437
  %v439 = vpop.f32.mrf.mxu0
  %v440 = vadd.f32 0.0, %v439
  %441 = vmatmul.bf16.gmra.mxu0 %v368
  %v442 = vpop.f32.mrf.mxu0
  %v443 = vadd.f32 0.0, %v442
  %v444 = vpop.f32.mrf.mxu0
  %v445 = vadd.f32 0.0, %v444
  %446 = vmatmul.bf16.gmra.mxu0 %v371
  %v447 = vpop.f32.mrf.mxu0
  %v448 = vadd.f32 0.0, %v447
  %v449 = vpop.f32.mrf.mxu0
  %v450 = vadd.f32 0.0, %v449
  %451 = vmatmul.bf16.gmra.mxu0 %v374
  %v452 = vpop.f32.mrf.mxu0
  %v453 = vadd.f32 0.0, %v452
  %v454 = vpop.f32.mrf.mxu0
  %v455 = vadd.f32 0.0, %v454
  %456 = vmatmul.bf16.gmra.mxu0 %v377
  %v457 = vpop.f32.mrf.mxu0
  %v458 = vadd.f32 0.0, %v457
  %v459 = vpop.f32.mrf.mxu0
  %v460 = vadd.f32 0.0, %v459
  %461 = vmatmul.bf16.gmra.mxu0 %v380
  %v462 = vpop.f32.mrf.mxu0
  %v463 = vadd.f32 0.0, %v462
  %v464 = vpop.f32.mrf.mxu0
  %v465 = vadd.f32 0.0, %v464
  %466 = vmatmul.bf16.gmra.mxu0 %v383
  %v467 = vpop.f32.mrf.mxu0
  %v468 = vadd.f32 0.0, %v467
  %v469 = vpop.f32.mrf.mxu0
  %v470 = vadd.f32 0.0, %v469
  %471 = vmatmul.bf16.gmra.mxu0 %v386
  %v472 = vpop.f32.mrf.mxu0
  %v473 = vadd.f32 0.0, %v472
  %v474 = vpop.f32.mrf.mxu0
  %v475 = vadd.f32 0.0, %v474
  %476 = vdwg.mxu0
  %v477 = vmax.f32 %v398, 0.0
  %v478 = vmax.f32 %v400, 0.0
  %v479 = vmax.f32 %v403, 0.0
  %v480 = vmax.f32 %v405, 0.0
  %v481 = vmax.f32 %v408, 0.0
  %v482 = vmax.f32 %v410, 0.0
  %v483 = vmax.f32 %v413, 0.0
  %v484 = vmax.f32 %v415, 0.0
  %v485 = vmax.f32 %v418, 0.0
  %v486 = vmax.f32 %v420, 0.0
  %v487 = vmax.f32 %v423, 0.0
  %v488 = vmax.f32 %v425, 0.0
  %v489 = vmax.f32 %v428, 0.0
  %v490 = vmax.f32 %v430, 0.0
  %v491 = vmax.f32 %v433, 0.0
  %v492 = vmax.f32 %v435, 0.0
  %v493 = vmax.f32 %v438, 0.0
  %v494 = vmax.f32 %v440, 0.0
  %v495 = vmax.f32 %v443, 0.0
  %v496 = vmax.f32 %v445, 0.0
  %v497 = vmax.f32 %v448, 0.0
  %v498 = vmax.f32 %v450, 0.0
  %v499 = vmax.f32 %v453, 0.0
  %v500 = vmax.f32 %v455, 0.0
  %v501 = vmax.f32 %v458, 0.0
  %v502 = vmax.f32 %v460, 0.0
  %v503 = vmax.f32 %v463, 0.0
  %v504 = vmax.f32 %v465, 0.0
  %v505 = vmax.f32 %v468, 0.0
  %v506 = vmax.f32 %v470, 0.0
  %v507 = vmax.f32 %v473, 0.0
  %v508 = vmax.f32 %v475, 0.0
  %v509 = vpack.c.bf16 %v478, %v477
  %v510 = vpack.c.bf16 %v480, %v479
  %v511 = vpack.c.bf16 %v482, %v481
  %v512 = vpack.c.bf16 %v484, %v483
  %v513 = vpack.c.bf16 %v486, %v485
  %v514 = vpack.c.bf16 %v488, %v487
  %v515 = vpack.c.bf16 %v490, %v489
  %v516 = vpack.c.bf16 %v492, %v491
  %v517 = vpack.c.bf16 %v494, %v493
  %v518 = vpack.c.bf16 %v496, %v495
  %v519 = vpack.c.bf16 %v498, %v497
  %v520 = vpack.c.bf16 %v500, %v499
  %v521 = vpack.c.bf16 %v502, %v501
  %v522 = vpack.c.bf16 %v504, %v503
  %v523 = vpack.c.bf16 %v506, %v505
  %v524 = vpack.c.bf16 %v508, %v507
  %v525 = vpack.c.bf16 %v192, %v191
  %v526 = vpack.c.bf16 %v194, %v193
  %v528 = vperm.slane %v195, 0
  %v531 = vsel %vm339, %v509, 0
  %v534 = vsel %vm339, %v510, 0
  %v537 = vsel %vm339, %v511, 0
  %v540 = vsel %vm339, %v512, 0
  %v543 = vsel %vm339, %v513, 0
  %v546 = vsel %vm339, %v514, 0
  %v549 = vsel %vm339, %v515, 0
  %v552 = vsel %vm339, %v516, 0
  %v555 = vsel %vm339, %v517, 0
  %v558 = vsel %vm339, %v518, 0
  %v561 = vsel %vm339, %v519, 0
  %v564 = vsel %vm339, %v520, 0
  %v567 = vsel %vm339, %v521, 0
  %v570 = vsel %vm339, %v522, 0
  %v573 = vsel %vm339, %v523, 0
  %v576 = vsel %vm339, %v524, 0
  %578 = vmatpush.bf16.msra.mxu0 0
  %579 = vmatpush.bf16.msra.mxu0 0
  %580 = vmatpush.bf16.msra.mxu0 0
  %581 = vmatpush.bf16.msra.mxu0 0
  %582 = vmatpush.bf16.msra.mxu0 0
  %583 = vmatpush.bf16.msra.mxu0 0
  %584 = vmatpush.bf16.msra.mxu0 %v526
  %585 = vmatpush.bf16.msra.mxu0 %v525
  %586 = vmatmul.bf16.gmra.mxu0 %v531
  %v587 = vpop.f32.mrf.mxu0
  %v588 = vadd.f32 %v528, %v587
  %v589 = vpop.f32.mrf.mxu0
  %v590 = vadd.f32 %v528, %v589
  %591 = vmatmul.bf16.gmra.mxu0 %v534
  %v592 = vpop.f32.mrf.mxu0
  %v593 = vadd.f32 %v528, %v592
  %v594 = vpop.f32.mrf.mxu0
  %v595 = vadd.f32 %v528, %v594
  %596 = vmatmul.bf16.gmra.mxu0 %v537
  %v597 = vpop.f32.mrf.mxu0
  %v598 = vadd.f32 %v528, %v597
  %v599 = vpop.f32.mrf.mxu0
  %v600 = vadd.f32 %v528, %v599
  %601 = vmatmul.bf16.gmra.mxu0 %v540
  %v602 = vpop.f32.mrf.mxu0
  %v603 = vadd.f32 %v528, %v602
  %v604 = vpop.f32.mrf.mxu0
  %v605 = vadd.f32 %v528, %v604
  %606 = vmatmul.bf16.gmra.mxu0 %v543
  %v607 = vpop.f32.mrf.mxu0
  %v608 = vadd.f32 %v528, %v607
  %v609 = vpop.f32.mrf.mxu0
  %v610 = vadd.f32 %v528, %v609
  %611 = vmatmul.bf16.gmra.mxu0 %v546
  %v612 = vpop.f32.mrf.mxu0
  %v613 = vadd.f32 %v528, %v612
  %v614 = vpop.f32.mrf.mxu0
  %v615 = vadd.f32 %v528, %v614
  %616 = vmatmul.bf16.gmra.mxu0 %v549
  %v617 = vpop.f32.mrf.mxu0
  %v618 = vadd.f32 %v528, %v617
  %v619 = vpop.f32.mrf.mxu0
  %v620 = vadd.f32 %v528, %v619
  %621 = vmatmul.bf16.gmra.mxu0 %v552
  %v622 = vpop.f32.mrf.mxu0
  %v623 = vadd.f32 %v528, %v622
  %v624 = vpop.f32.mrf.mxu0
  %v625 = vadd.f32 %v528, %v624
  %626 = vmatmul.bf16.gmra.mxu0 %v555
  %v627 = vpop.f32.mrf.mxu0
  %v628 = vadd.f32 %v528, %v627
  %v629 = vpop.f32.mrf.mxu0
  %v630 = vadd.f32 %v528, %v629
  %631 = vmatmul.bf16.gmra.mxu0 %v558
  %v632 = vpop.f32.mrf.mxu0
  %v633 = vadd.f32 %v528, %v632
  %v634 = vpop.f32.mrf.mxu0
  %v635 = vadd.f32 %v528, %v634
  %636 = vmatmul.bf16.gmra.mxu0 %v561
  %v637 = vpop.f32.mrf.mxu0
  %v638 = vadd.f32 %v528, %v637
  %v639 = vpop.f32.mrf.mxu0
  %v640 = vadd.f32 %v528, %v639
  %641 = vmatmul.bf16.gmra.mxu0 %v564
  %v642 = vpop.f32.mrf.mxu0
  %v643 = vadd.f32 %v528, %v642
  %v644 = vpop.f32.mrf.mxu0
  %v645 = vadd.f32 %v528, %v644
  %646 = vmatmul.bf16.gmra.mxu0 %v567
  %v647 = vpop.f32.mrf.mxu0
  %v648 = vadd.f32 %v528, %v647
  %v649 = vpop.f32.mrf.mxu0
  %v650 = vadd.f32 %v528, %v649
  %651 = vmatmul.bf16.gmra.mxu0 %v570
  %v652 = vpop.f32.mrf.mxu0
  %v653 = vadd.f32 %v528, %v652
  %v654 = vpop.f32.mrf.mxu0
  %v655 = vadd.f32 %v528, %v654
  %656 = vmatmul.bf16.gmra.mxu0 %v573
  %v657 = vpop.f32.mrf.mxu0
  %v658 = vadd.f32 %v528, %v657
  %v659 = vpop.f32.mrf.mxu0
  %v660 = vadd.f32 %v528, %v659
  %661 = vmatmul.bf16.gmra.mxu0 %v576
  %v662 = vpop.f32.mrf.mxu0
  %v663 = vadd.f32 %v528, %v662
  %v664 = vpop.f32.mrf.mxu0
  %v665 = vadd.f32 %v528, %v664
  %666 = vdwg.mxu0
  %v667 = vmax.f32 %v588, 0.0
  %v668 = vmax.f32 %v590, 0.0
  %v669 = vmax.f32 %v593, 0.0
  %v670 = vmax.f32 %v595, 0.0
  %v671 = vmax.f32 %v598, 0.0
  %v672 = vmax.f32 %v600, 0.0
  %v673 = vmax.f32 %v603, 0.0
  %v674 = vmax.f32 %v605, 0.0
  %v675 = vmax.f32 %v608, 0.0
  %v676 = vmax.f32 %v610, 0.0
  %v677 = vmax.f32 %v613, 0.0
  %v678 = vmax.f32 %v615, 0.0
  %v679 = vmax.f32 %v618, 0.0
  %v680 = vmax.f32 %v620, 0.0
  %v681 = vmax.f32 %v623, 0.0
  %v682 = vmax.f32 %v625, 0.0
  %v683 = vmax.f32 %v628, 0.0
  %v684 = vmax.f32 %v630, 0.0
  %v685 = vmax.f32 %v633, 0.0
  %v686 = vmax.f32 %v635, 0.0
  %v687 = vmax.f32 %v638, 0.0
  %v688 = vmax.f32 %v640, 0.0
  %v689 = vmax.f32 %v643, 0.0
  %v690 = vmax.f32 %v645, 0.0
  %v691 = vmax.f32 %v648, 0.0
  %v692 = vmax.f32 %v650, 0.0
  %v693 = vmax.f32 %v653, 0.0
  %v694 = vmax.f32 %v655, 0.0
  %v695 = vmax.f32 %v658, 0.0
  %v696 = vmax.f32 %v660, 0.0
  %v697 = vmax.f32 %v663, 0.0
  %v698 = vmax.f32 %v665, 0.0
  %v699 = vpack.c.bf16 %v668, %v667
  %v700 = vpack.c.bf16 %v670, %v669
  %v701 = vpack.c.bf16 %v672, %v671
  %v702 = vpack.c.bf16 %v674, %v673
  %v703 = vpack.c.bf16 %v676, %v675
  %v704 = vpack.c.bf16 %v678, %v677
  %v705 = vpack.c.bf16 %v680, %v679
  %v706 = vpack.c.bf16 %v682, %v681
  %v707 = vpack.c.bf16 %v684, %v683
  %v708 = vpack.c.bf16 %v686, %v685
  %v709 = vpack.c.bf16 %v688, %v687
  %v710 = vpack.c.bf16 %v690, %v689
  %v711 = vpack.c.bf16 %v692, %v691
  %v712 = vpack.c.bf16 %v694, %v693
  %v713 = vpack.c.bf16 %v696, %v695
  %v714 = vpack.c.bf16 %v698, %v697
  %v715 = vpack.c.bf16 %v197, %v196
  %v716 = vpack.c.bf16 %v199, %v198
  %v718 = vperm.slane %v200, 0
  %v721 = vsel %vm339, %v699, 0
  %v724 = vsel %vm339, %v700, 0
  %v727 = vsel %vm339, %v701, 0
  %v730 = vsel %vm339, %v702, 0
  %v733 = vsel %vm339, %v703, 0
  %v736 = vsel %vm339, %v704, 0
  %v739 = vsel %vm339, %v705, 0
  %v742 = vsel %vm339, %v706, 0
  %v745 = vsel %vm339, %v707, 0
  %v748 = vsel %vm339, %v708, 0
  %v751 = vsel %vm339, %v709, 0
  %v754 = vsel %vm339, %v710, 0
  %v757 = vsel %vm339, %v711, 0
  %v760 = vsel %vm339, %v712, 0
  %v763 = vsel %vm339, %v713, 0
  %v766 = vsel %vm339, %v714, 0
  %768 = vmatpush.bf16.msra.mxu0 0
  %769 = vmatpush.bf16.msra.mxu0 0
  %770 = vmatpush.bf16.msra.mxu0 0
  %771 = vmatpush.bf16.msra.mxu0 0
  %772 = vmatpush.bf16.msra.mxu0 0
  %773 = vmatpush.bf16.msra.mxu0 0
  %774 = vmatpush.bf16.msra.mxu0 %v716
  %775 = vmatpush.bf16.msra.mxu0 %v715
  %776 = vmatmul.bf16.gmra.mxu0 %v721
  %v777 = vpop.f32.mrf.mxu0
  %v778 = vadd.f32 %v718, %v777
  %v779 = vpop.f32.mrf.mxu0
  %v780 = vadd.f32 %v718, %v779
  %781 = vmatmul.bf16.gmra.mxu0 %v724
  %v782 = vpop.f32.mrf.mxu0
  %v783 = vadd.f32 %v718, %v782
  %v784 = vpop.f32.mrf.mxu0
  %v785 = vadd.f32 %v718, %v784
  %786 = vmatmul.bf16.gmra.mxu0 %v727
  %v787 = vpop.f32.mrf.mxu0
  %v788 = vadd.f32 %v718, %v787
  %v789 = vpop.f32.mrf.mxu0
  %v790 = vadd.f32 %v718, %v789
  %791 = vmatmul.bf16.gmra.mxu0 %v730
  %v792 = vpop.f32.mrf.mxu0
  %v793 = vadd.f32 %v718, %v792
  %v794 = vpop.f32.mrf.mxu0
  %v795 = vadd.f32 %v718, %v794
  %796 = vmatmul.bf16.gmra.mxu0 %v733
  %v797 = vpop.f32.mrf.mxu0
  %v798 = vadd.f32 %v718, %v797
  %v799 = vpop.f32.mrf.mxu0
  %v800 = vadd.f32 %v718, %v799
  %801 = vmatmul.bf16.gmra.mxu0 %v736
  %v802 = vpop.f32.mrf.mxu0
  %v803 = vadd.f32 %v718, %v802
  %v804 = vpop.f32.mrf.mxu0
  %v805 = vadd.f32 %v718, %v804
  %806 = vmatmul.bf16.gmra.mxu0 %v739
  %v807 = vpop.f32.mrf.mxu0
  %v808 = vadd.f32 %v718, %v807
  %v809 = vpop.f32.mrf.mxu0
  %v810 = vadd.f32 %v718, %v809
  %811 = vmatmul.bf16.gmra.mxu0 %v742
  %v812 = vpop.f32.mrf.mxu0
  %v813 = vadd.f32 %v718, %v812
  %v814 = vpop.f32.mrf.mxu0
  %v815 = vadd.f32 %v718, %v814
  %816 = vmatmul.bf16.gmra.mxu0 %v745
  %v817 = vpop.f32.mrf.mxu0
  %v818 = vadd.f32 %v718, %v817
  %v819 = vpop.f32.mrf.mxu0
  %v820 = vadd.f32 %v718, %v819
  %821 = vmatmul.bf16.gmra.mxu0 %v748
  %v822 = vpop.f32.mrf.mxu0
  %v823 = vadd.f32 %v718, %v822
  %v824 = vpop.f32.mrf.mxu0
  %v825 = vadd.f32 %v718, %v824
  %826 = vmatmul.bf16.gmra.mxu0 %v751
  %v827 = vpop.f32.mrf.mxu0
  %v828 = vadd.f32 %v718, %v827
  %v829 = vpop.f32.mrf.mxu0
  %v830 = vadd.f32 %v718, %v829
  %831 = vmatmul.bf16.gmra.mxu0 %v754
  %v832 = vpop.f32.mrf.mxu0
  %v833 = vadd.f32 %v718, %v832
  %v834 = vpop.f32.mrf.mxu0
  %v835 = vadd.f32 %v718, %v834
  %836 = vmatmul.bf16.gmra.mxu0 %v757
  %v837 = vpop.f32.mrf.mxu0
  %v838 = vadd.f32 %v718, %v837
  %v839 = vpop.f32.mrf.mxu0
  %v840 = vadd.f32 %v718, %v839
  %841 = vmatmul.bf16.gmra.mxu0 %v760
  %v842 = vpop.f32.mrf.mxu0
  %v843 = vadd.f32 %v718, %v842
  %v844 = vpop.f32.mrf.mxu0
  %v845 = vadd.f32 %v718, %v844
  %846 = vmatmul.bf16.gmra.mxu0 %v763
  %v847 = vpop.f32.mrf.mxu0
  %v848 = vadd.f32 %v718, %v847
  %v849 = vpop.f32.mrf.mxu0
  %v850 = vadd.f32 %v718, %v849
  %851 = vmatmul.bf16.gmra.mxu0 %v766
  %v852 = vpop.f32.mrf.mxu0
  %v853 = vadd.f32 %v718, %v852
  %v854 = vpop.f32.mrf.mxu0
  %v855 = vadd.f32 %v718, %v854
  %856 = vdwg.mxu0
  %858 = vset.pattern.permute.xlu0 0
  %859 = vperm.xlu0 %858, %v115
  %v860 = vpop.permute.xlu0 %859
  %863 = vset.pattern.permute.xlu0 0
  %864 = vperm.xlu0 %863, %v116
  %v865 = vpop.permute.xlu0 %864
  %868 = vset.pattern.permute.xlu0 0
  %869 = vperm.xlu0 %868, %v117
  %v870 = vpop.permute.xlu0 %869
  %873 = vset.pattern.permute.xlu0 0
  %874 = vperm.xlu0 %873, %v118
  %v875 = vpop.permute.xlu0 %874
  %878 = vset.pattern.permute.xlu0 0
  %879 = vperm.xlu0 %878, %v119
  %v880 = vpop.permute.xlu0 %879
  %883 = vset.pattern.permute.xlu0 0
  %884 = vperm.xlu0 %883, %v120
  %v885 = vpop.permute.xlu0 %884
  %888 = vset.pattern.permute.xlu0 0
  %889 = vperm.xlu0 %888, %v121
  %v890 = vpop.permute.xlu0 %889
  %893 = vset.pattern.permute.xlu0 0
  %894 = vperm.xlu0 %893, %v122
  %v895 = vpop.permute.xlu0 %894
  %898 = vset.pattern.permute.xlu0 0
  %899 = vperm.xlu0 %898, %v123
  %v900 = vpop.permute.xlu0 %899
  %903 = vset.pattern.permute.xlu0 0
  %904 = vperm.xlu0 %903, %v124
  %v905 = vpop.permute.xlu0 %904
  %908 = vset.pattern.permute.xlu0 0
  %909 = vperm.xlu0 %908, %v125
  %v910 = vpop.permute.xlu0 %909
  %913 = vset.pattern.permute.xlu0 0
  %914 = vperm.xlu0 %913, %v126
  %v915 = vpop.permute.xlu0 %914
  %918 = vset.pattern.permute.xlu0 0
  %919 = vperm.xlu0 %918, %v127
  %v920 = vpop.permute.xlu0 %919
  %923 = vset.pattern.permute.xlu0 0
  %924 = vperm.xlu0 %923, %v128
  %v925 = vpop.permute.xlu0 %924
  %928 = vset.pattern.permute.xlu0 0
  %929 = vperm.xlu0 %928, %v129
  %v930 = vpop.permute.xlu0 %929
  %933 = vset.pattern.permute.xlu0 0
  %934 = vperm.xlu0 %933, %v130
  %v935 = vpop.permute.xlu0 %934
  %938 = vset.pattern.permute.xlu0 0
  %939 = vperm.xlu0 %938, %v131
  %v940 = vpop.permute.xlu0 %939
  %943 = vset.pattern.permute.xlu0 0
  %944 = vperm.xlu0 %943, %v132
  %v945 = vpop.permute.xlu0 %944
  %948 = vset.pattern.permute.xlu0 0
  %949 = vperm.xlu0 %948, %v133
  %v950 = vpop.permute.xlu0 %949
  %953 = vset.pattern.permute.xlu0 0
  %954 = vperm.xlu0 %953, %v134
  %v955 = vpop.permute.xlu0 %954
  %958 = vset.pattern.permute.xlu0 0
  %959 = vperm.xlu0 %958, %v135
  %v960 = vpop.permute.xlu0 %959
  %963 = vset.pattern.permute.xlu0 0
  %964 = vperm.xlu0 %963, %v136
  %v965 = vpop.permute.xlu0 %964
  %968 = vset.pattern.permute.xlu0 0
  %969 = vperm.xlu0 %968, %v137
  %v970 = vpop.permute.xlu0 %969
  %973 = vset.pattern.permute.xlu0 0
  %974 = vperm.xlu0 %973, %v138
  %v975 = vpop.permute.xlu0 %974
  %978 = vset.pattern.permute.xlu0 0
  %979 = vperm.xlu0 %978, %v139
  %v980 = vpop.permute.xlu0 %979
  %983 = vset.pattern.permute.xlu0 0
  %984 = vperm.xlu0 %983, %v140
  %v985 = vpop.permute.xlu0 %984
  %988 = vset.pattern.permute.xlu0 0
  %989 = vperm.xlu0 %988, %v141
  %v990 = vpop.permute.xlu0 %989
  %993 = vset.pattern.permute.xlu0 0
  %994 = vperm.xlu0 %993, %v142
  %v995 = vpop.permute.xlu0 %994
  %998 = vset.pattern.permute.xlu0 0
  %999 = vperm.xlu0 %998, %v143
  %v1000 = vpop.permute.xlu0 %999
  %1003 = vset.pattern.permute.xlu0 0
  %1004 = vperm.xlu0 %1003, %v144
  %v1005 = vpop.permute.xlu0 %1004
  %1008 = vset.pattern.permute.xlu0 0
  %1009 = vperm.xlu0 %1008, %v145
  %v1010 = vpop.permute.xlu0 %1009
  %1013 = vset.pattern.permute.xlu0 0
  %1014 = vperm.xlu0 %1013, %v146
  %v1015 = vpop.permute.xlu0 %1014
  %v1017 = vadd.f32 %v778, %v860
  %v1018 = vadd.f32 %v780, %v865
  %v1019 = vadd.f32 %v783, %v870
  %v1020 = vadd.f32 %v785, %v875
  %v1021 = vadd.f32 %v788, %v880
  %v1022 = vadd.f32 %v790, %v885
  %v1023 = vadd.f32 %v793, %v890
  %v1024 = vadd.f32 %v795, %v895
  %v1025 = vadd.f32 %v798, %v900
  %v1026 = vadd.f32 %v800, %v905
  %v1027 = vadd.f32 %v803, %v910
  %v1028 = vadd.f32 %v805, %v915
  %v1029 = vadd.f32 %v808, %v920
  %v1030 = vadd.f32 %v810, %v925
  %v1031 = vadd.f32 %v813, %v930
  %v1032 = vadd.f32 %v815, %v935
  %v1033 = vadd.f32 %v818, %v940
  %v1034 = vadd.f32 %v820, %v945
  %v1035 = vadd.f32 %v823, %v950
  %v1036 = vadd.f32 %v825, %v955
  %v1037 = vadd.f32 %v828, %v960
  %v1038 = vadd.f32 %v830, %v965
  %v1039 = vadd.f32 %v833, %v970
  %v1040 = vadd.f32 %v835, %v975
  %v1041 = vadd.f32 %v838, %v980
  %v1042 = vadd.f32 %v840, %v985
  %v1043 = vadd.f32 %v843, %v990
  %v1044 = vadd.f32 %v845, %v995
  %v1045 = vadd.f32 %v848, %v1000
  %v1046 = vadd.f32 %v850, %v1005
  %v1047 = vadd.f32 %v853, %v1010
  %v1048 = vadd.f32 %v855, %v1015
  %v1049 = vmax.f32 %v1017, %v1033
  %v1050 = vmax.f32 %v1018, %v1034
  %v1051 = vmax.f32 %v1019, %v1035
  %v1052 = vmax.f32 %v1020, %v1036
  %v1053 = vmax.f32 %v1021, %v1037
  %v1054 = vmax.f32 %v1022, %v1038
  %v1055 = vmax.f32 %v1023, %v1039
  %v1056 = vmax.f32 %v1024, %v1040
  %v1057 = vmax.f32 %v1025, %v1041
  %v1058 = vmax.f32 %v1026, %v1042
  %v1059 = vmax.f32 %v1027, %v1043
  %v1060 = vmax.f32 %v1028, %v1044
  %v1061 = vmax.f32 %v1029, %v1045
  %v1062 = vmax.f32 %v1030, %v1046
  %v1063 = vmax.f32 %v1031, %v1047
  %v1064 = vmax.f32 %v1032, %v1048
  %v1065 = vmax.f32 %v1049, %v1057
  %v1066 = vmax.f32 %v1050, %v1058
  %v1067 = vmax.f32 %v1051, %v1059
  %v1068 = vmax.f32 %v1052, %v1060
  %v1069 = vmax.f32 %v1053, %v1061
  %v1070 = vmax.f32 %v1054, %v1062
  %v1071 = vmax.f32 %v1055, %v1063
  %v1072 = vmax.f32 %v1056, %v1064
  %v1073 = vmax.f32 %v1065, %v1069
  %v1074 = vmax.f32 %v1066, %v1070
  %v1075 = vmax.f32 %v1067, %v1071
  %v1076 = vmax.f32 %v1068, %v1072
  %v1077 = vmax.f32 %v1073, %v1075
  %v1078 = vmax.f32 %v1074, %v1076
  %v1079 = vmax.f32 %v1077, 0.0
  %v1080 = vmax.f32 %v1078, 0.0
  %v1081 = vld [vmem:[%s12] sm:$0xff]
  %v1082 = vld [vmem:[%s13] sm:$0xff]
  %v1083 = vld [vmem:[%s14] sm:$0x1]
  %v1084 = vld [vmem:[%s15] sm:$0xff]
  %v1085 = vld [vmem:[%s15 + $0x8] sm:$0xff]
  %v1086 = vld [vmem:[%s15 + $0x10] sm:$0xff]
  %v1087 = vld [vmem:[%s15 + $0x18] sm:$0xff]
  %v1088 = vld [vmem:[%s16] sm:$0x1]
  %v1089 = vld [vmem:[%s17] sm:$0xff]
  %v1090 = vld [vmem:[%s17 + $0x8] sm:$0xff]
  %v1091 = vld [vmem:[%s17 + $0x10] sm:$0xff]
  %v1092 = vld [vmem:[%s17 + $0x18] sm:$0xff]
  %v1093 = vld [vmem:[%s18] sm:$0x1]
  %v1095 = vperm.slane %v1083, 0
  %v1098 = vsel %vm204, %v1079, 0
  %v1101 = vsel %vm204, %v1080, 0
  %1103 = vmatpush.msra.mxu0 0.0
  %1104 = vmatpush.msra.mxu0 0.0
  %1105 = vmatpush.msra.mxu0 0.0
  %1106 = vmatpush.msra.mxu0 0.0
  %1107 = vmatpush.msra.mxu0 0.0
  %1108 = vmatpush.msra.mxu0 0.0
  %1109 = vmatpush.msra.mxu0 0.0
  %1110 = vmatpush.msra.mxu0 0.0
  %1111 = vmatpush.msra.mxu0 0.0
  %1112 = vmatpush.msra.mxu0 0.0
  %1113 = vmatpush.msra.mxu0 0.0
  %1114 = vmatpush.msra.mxu0 0.0
  %1115 = vmatpush.msra.mxu0 0.0
  %1116 = vmatpush.msra.mxu0 0.0
  %1117 = vmatpush.msra.mxu0 0.0
  %1118 = vmatpush.msra.mxu0 %v1081
  %1119 = vmatmul.f32.gmra.mxu0 %v1098
  %v1120 = vpop.f32.mrf.mxu0
  %v1121 = vadd.f32 %v1095, %v1120
  %1122 = vmatmul.f32.gmra.mxu0 %v1101
  %v1123 = vpop.f32.mrf.mxu0
  %v1124 = vadd.f32 %v1095, %v1123
  %1125 = vdwg.mxu0
  %1126 = vmatpush.msra.mxu0 0.0
  %1127 = vmatpush.msra.mxu0 0.0
  %1128 = vmatpush.msra.mxu0 0.0
  %1129 = vmatpush.msra.mxu0 0.0
  %1130 = vmatpush.msra.mxu0 0.0
  %1131 = vmatpush.msra.mxu0 0.0
  %1132 = vmatpush.msra.mxu0 0.0
  %1133 = vmatpush.msra.mxu0 0.0
  %1134 = vmatpush.msra.mxu0 0.0
  %1135 = vmatpush.msra.mxu0 0.0
  %1136 = vmatpush.msra.mxu0 0.0
  %1137 = vmatpush.msra.mxu0 0.0
  %1138 = vmatpush.msra.mxu0 0.0
  %1139 = vmatpush.msra.mxu0 0.0
  %1140 = vmatpush.msra.mxu0 0.0
  %1141 = vmatpush.msra.mxu0 %v1082
  %1142 = vmatmul.f32.gmra.mxu0 %v1098
  %v1143 = vpop.f32.mrf.mxu0
  %v1144 = vadd.f32 0.0, %v1143
  %1145 = vmatmul.f32.gmra.mxu0 %v1101
  %v1146 = vpop.f32.mrf.mxu0
  %v1147 = vadd.f32 0.0, %v1146
  %1148 = vdwg.mxu0
  %v1149 = vpack.c.bf16 %v1124, %v1121
  %v1150 = vpack.c.bf16 %v1147, %v1144
  %1151 = vmatpush.bf16.msra.mxu0 0
  %1152 = vmatpush.bf16.msra.mxu0 0
  %1153 = vmatpush.bf16.msra.mxu0 0
  %1154 = vmatpush.bf16.msra.mxu0 0
  %1155 = vmatpush.bf16.msra.mxu0 0
  %1156 = vmatpush.bf16.msra.mxu0 0
  %1157 = vmatpush.bf16.msra.mxu0 %v1150
  %1158 = vmatpush.bf16.msra.mxu0 %v1149
  %1159 = vmatmul.bf16.gmra.mxu0 %v341
  %v1160 = vpop.f32.mrf.mxu0
  %v1161 = vadd.f32 0.0, %v1160
  %v1162 = vpop.f32.mrf.mxu0
  %v1163 = vadd.f32 0.0, %v1162
  %1164 = vmatmul.bf16.gmra.mxu0 %v344
  %v1165 = vpop.f32.mrf.mxu0
  %v1166 = vadd.f32 0.0, %v1165
  %v1167 = vpop.f32.mrf.mxu0
  %v1168 = vadd.f32 0.0, %v1167
  %1169 = vmatmul.bf16.gmra.mxu0 %v347
  %v1170 = vpop.f32.mrf.mxu0
  %v1171 = vadd.f32 0.0, %v1170
  %v1172 = vpop.f32.mrf.mxu0
  %v1173 = vadd.f32 0.0, %v1172
  %1174 = vmatmul.bf16.gmra.mxu0 %v350
  %v1175 = vpop.f32.mrf.mxu0
  %v1176 = vadd.f32 0.0, %v1175
  %v1177 = vpop.f32.mrf.mxu0
  %v1178 = vadd.f32 0.0, %v1177
  %1179 = vmatmul.bf16.gmra.mxu0 %v353
  %v1180 = vpop.f32.mrf.mxu0
  %v1181 = vadd.f32 0.0, %v1180
  %v1182 = vpop.f32.mrf.mxu0
  %v1183 = vadd.f32 0.0, %v1182
  %1184 = vmatmul.bf16.gmra.mxu0 %v356
  %v1185 = vpop.f32.mrf.mxu0
  %v1186 = vadd.f32 0.0, %v1185
  %v1187 = vpop.f32.mrf.mxu0
  %v1188 = vadd.f32 0.0, %v1187
  %1189 = vmatmul.bf16.gmra.mxu0 %v359
  %v1190 = vpop.f32.mrf.mxu0
  %v1191 = vadd.f32 0.0, %v1190
  %v1192 = vpop.f32.mrf.mxu0
  %v1193 = vadd.f32 0.0, %v1192
  %1194 = vmatmul.bf16.gmra.mxu0 %v362
  %v1195 = vpop.f32.mrf.mxu0
  %v1196 = vadd.f32 0.0, %v1195
  %v1197 = vpop.f32.mrf.mxu0
  %v1198 = vadd.f32 0.0, %v1197
  %1199 = vmatmul.bf16.gmra.mxu0 %v365
  %v1200 = vpop.f32.mrf.mxu0
  %v1201 = vadd.f32 0.0, %v1200
  %v1202 = vpop.f32.mrf.mxu0
  %v1203 = vadd.f32 0.0, %v1202
  %1204 = vmatmul.bf16.gmra.mxu0 %v368
  %v1205 = vpop.f32.mrf.mxu0
  %v1206 = vadd.f32 0.0, %v1205
  %v1207 = vpop.f32.mrf.mxu0
  %v1208 = vadd.f32 0.0, %v1207
  %1209 = vmatmul.bf16.gmra.mxu0 %v371
  %v1210 = vpop.f32.mrf.mxu0
  %v1211 = vadd.f32 0.0, %v1210
  %v1212 = vpop.f32.mrf.mxu0
  %v1213 = vadd.f32 0.0, %v1212
  %1214 = vmatmul.bf16.gmra.mxu0 %v374
  %v1215 = vpop.f32.mrf.mxu0
  %v1216 = vadd.f32 0.0, %v1215
  %v1217 = vpop.f32.mrf.mxu0
  %v1218 = vadd.f32 0.0, %v1217
  %1219 = vmatmul.bf16.gmra.mxu0 %v377
  %v1220 = vpop.f32.mrf.mxu0
  %v1221 = vadd.f32 0.0, %v1220
  %v1222 = vpop.f32.mrf.mxu0
  %v1223 = vadd.f32 0.0, %v1222
  %1224 = vmatmul.bf16.gmra.mxu0 %v380
  %v1225 = vpop.f32.mrf.mxu0
  %v1226 = vadd.f32 0.0, %v1225
  %v1227 = vpop.f32.mrf.mxu0
  %v1228 = vadd.f32 0.0, %v1227
  %1229 = vmatmul.bf16.gmra.mxu0 %v383
  %v1230 = vpop.f32.mrf.mxu0
  %v1231 = vadd.f32 0.0, %v1230
  %v1232 = vpop.f32.mrf.mxu0
  %v1233 = vadd.f32 0.0, %v1232
  %1234 = vmatmul.bf16.gmra.mxu0 %v386
  %v1235 = vpop.f32.mrf.mxu0
  %v1236 = vadd.f32 0.0, %v1235
  %v1237 = vpop.f32.mrf.mxu0
  %v1238 = vadd.f32 0.0, %v1237
  %1239 = vdwg.mxu0
  %v1240 = vmax.f32 %v1161, 0.0
  %v1241 = vmax.f32 %v1163, 0.0
  %v1242 = vmax.f32 %v1166, 0.0
  %v1243 = vmax.f32 %v1168, 0.0
  %v1244 = vmax.f32 %v1171, 0.0
  %v1245 = vmax.f32 %v1173, 0.0
  %v1246 = vmax.f32 %v1176, 0.0
  %v1247 = vmax.f32 %v1178, 0.0
  %v1248 = vmax.f32 %v1181, 0.0
  %v1249 = vmax.f32 %v1183, 0.0
  %v1250 = vmax.f32 %v1186, 0.0
  %v1251 = vmax.f32 %v1188, 0.0
  %v1252 = vmax.f32 %v1191, 0.0
  %v1253 = vmax.f32 %v1193, 0.0
  %v1254 = vmax.f32 %v1196, 0.0
  %v1255 = vmax.f32 %v1198, 0.0
  %v1256 = vmax.f32 %v1201, 0.0
  %v1257 = vmax.f32 %v1203, 0.0
  %v1258 = vmax.f32 %v1206, 0.0
  %v1259 = vmax.f32 %v1208, 0.0
  %v1260 = vmax.f32 %v1211, 0.0
  %v1261 = vmax.f32 %v1213, 0.0
  %v1262 = vmax.f32 %v1216, 0.0
  %v1263 = vmax.f32 %v1218, 0.0
  %v1264 = vmax.f32 %v1221, 0.0
  %v1265 = vmax.f32 %v1223, 0.0
  %v1266 = vmax.f32 %v1226, 0.0
  %v1267 = vmax.f32 %v1228, 0.0
  %v1268 = vmax.f32 %v1231, 0.0
  %v1269 = vmax.f32 %v1233, 0.0
  %v1270 = vmax.f32 %v1236, 0.0
  %v1271 = vmax.f32 %v1238, 0.0
  %v1272 = vpack.c.bf16 %v1241, %v1240
  %v1273 = vpack.c.bf16 %v1243, %v1242
  %v1274 = vpack.c.bf16 %v1245, %v1244
  %v1275 = vpack.c.bf16 %v1247, %v1246
  %v1276 = vpack.c.bf16 %v1249, %v1248
  %v1277 = vpack.c.bf16 %v1251, %v1250
  %v1278 = vpack.c.bf16 %v1253, %v1252
  %v1279 = vpack.c.bf16 %v1255, %v1254
  %v1280 = vpack.c.bf16 %v1257, %v1256
  %v1281 = vpack.c.bf16 %v1259, %v1258
  %v1282 = vpack.c.bf16 %v1261, %v1260
  %v1283 = vpack.c.bf16 %v1263, %v1262
  %v1284 = vpack.c.bf16 %v1265, %v1264
  %v1285 = vpack.c.bf16 %v1267, %v1266
  %v1286 = vpack.c.bf16 %v1269, %v1268
  %v1287 = vpack.c.bf16 %v1271, %v1270
  %v1288 = vpack.c.bf16 %v1085, %v1084
  %v1289 = vpack.c.bf16 %v1087, %v1086
  %v1291 = vperm.slane %v1088, 0
  %v1294 = vsel %vm339, %v1272, 0
  %v1297 = vsel %vm339, %v1273, 0
  %v1300 = vsel %vm339, %v1274, 0
  %v1303 = vsel %vm339, %v1275, 0
  %v1306 = vsel %vm339, %v1276, 0
  %v1309 = vsel %vm339, %v1277, 0
  %v1312 = vsel %vm339, %v1278, 0
  %v1315 = vsel %vm339, %v1279, 0
  %v1318 = vsel %vm339, %v1280, 0
  %v1321 = vsel %vm339, %v1281, 0
  %v1324 = vsel %vm339, %v1282, 0
  %v1327 = vsel %vm339, %v1283, 0
  %v1330 = vsel %vm339, %v1284, 0
  %v1333 = vsel %vm339, %v1285, 0
  %v1336 = vsel %vm339, %v1286, 0
  %v1339 = vsel %vm339, %v1287, 0
  %1341 = vmatpush.bf16.msra.mxu0 0
  %1342 = vmatpush.bf16.msra.mxu0 0
  %1343 = vmatpush.bf16.msra.mxu0 0
  %1344 = vmatpush.bf16.msra.mxu0 0
  %1345 = vmatpush.bf16.msra.mxu0 0
  %1346 = vmatpush.bf16.msra.mxu0 0
  %1347 = vmatpush.bf16.msra.mxu0 %v1289
  %1348 = vmatpush.bf16.msra.mxu0 %v1288
  %1349 = vmatmul.bf16.gmra.mxu0 %v1294
  %v1350 = vpop.f32.mrf.mxu0
  %v1351 = vadd.f32 %v1291, %v1350
  %v1352 = vpop.f32.mrf.mxu0
  %v1353 = vadd.f32 %v1291, %v1352
  %1354 = vmatmul.bf16.gmra.mxu0 %v1297
  %v1355 = vpop.f32.mrf.mxu0
  %v1356 = vadd.f32 %v1291, %v1355
  %v1357 = vpop.f32.mrf.mxu0
  %v1358 = vadd.f32 %v1291, %v1357
  %1359 = vmatmul.bf16.gmra.mxu0 %v1300
  %v1360 = vpop.f32.mrf.mxu0
  %v1361 = vadd.f32 %v1291, %v1360
  %v1362 = vpop.f32.mrf.mxu0
  %v1363 = vadd.f32 %v1291, %v1362
  %1364 = vmatmul.bf16.gmra.mxu0 %v1303
  %v1365 = vpop.f32.mrf.mxu0
  %v1366 = vadd.f32 %v1291, %v1365
  %v1367 = vpop.f32.mrf.mxu0
  %v1368 = vadd.f32 %v1291, %v1367
  %1369 = vmatmul.bf16.gmra.mxu0 %v1306
  %v1370 = vpop.f32.mrf.mxu0
  %v1371 = vadd.f32 %v1291, %v1370
  %v1372 = vpop.f32.mrf.mxu0
  %v1373 = vadd.f32 %v1291, %v1372
  %1374 = vmatmul.bf16.gmra.mxu0 %v1309
  %v1375 = vpop.f32.mrf.mxu0
  %v1376 = vadd.f32 %v1291, %v1375
  %v1377 = vpop.f32.mrf.mxu0
  %v1378 = vadd.f32 %v1291, %v1377
  %1379 = vmatmul.bf16.gmra.mxu0 %v1312
  %v1380 = vpop.f32.mrf.mxu0
  %v1381 = vadd.f32 %v1291, %v1380
  %v1382 = vpop.f32.mrf.mxu0
  %v1383 = vadd.f32 %v1291, %v1382
  %1384 = vmatmul.bf16.gmra.mxu0 %v1315
  %v1385 = vpop.f32.mrf.mxu0
  %v1386 = vadd.f32 %v1291, %v1385
  %v1387 = vpop.f32.mrf.mxu0
  %v1388 = vadd.f32 %v1291, %v1387
  %1389 = vmatmul.bf16.gmra.mxu0 %v1318
  %v1390 = vpop.f32.mrf.mxu0
  %v1391 = vadd.f32 %v1291, %v1390
  %v1392 = vpop.f32.mrf.mxu0
  %v1393 = vadd.f32 %v1291, %v1392
  %1394 = vmatmul.bf16.gmra.mxu0 %v1321
  %v1395 = vpop.f32.mrf.mxu0
  %v1396 = vadd.f32 %v1291, %v1395
  %v1397 = vpop.f32.mrf.mxu0
  %v1398 = vadd.f32 %v1291, %v1397
  %1399 = vmatmul.bf16.gmra.mxu0 %v1324
  %v1400 = vpop.f32.mrf.mxu0
  %v1401 = vadd.f32 %v1291, %v1400
  %v1402 = vpop.f32.mrf.mxu0
  %v1403 = vadd.f32 %v1291, %v1402
  %1404 = vmatmul.bf16.gmra.mxu0 %v1327
  %v1405 = vpop.f32.mrf.mxu0
  %v1406 = vadd.f32 %v1291, %v1405
  %v1407 = vpop.f32.mrf.mxu0
  %v1408 = vadd.f32 %v1291, %v1407
  %1409 = vmatmul.bf16.gmra.mxu0 %v1330
  %v1410 = vpop.f32.mrf.mxu0
  %v1411 = vadd.f32 %v1291, %v1410
  %v1412 = vpop.f32.mrf.mxu0
  %v1413 = vadd.f32 %v1291, %v1412
  %1414 = vmatmul.bf16.gmra.mxu0 %v1333
  %v1415 = vpop.f32.mrf.mxu0
  %v1416 = vadd.f32 %v1291, %v1415
  %v1417 = vpop.f32.mrf.mxu0
  %v1418 = vadd.f32 %v1291, %v1417
  %1419 = vmatmul.bf16.gmra.mxu0 %v1336
  %v1420 = vpop.f32.mrf.mxu0
  %v1421 = vadd.f32 %v1291, %v1420
  %v1422 = vpop.f32.mrf.mxu0
  %v1423 = vadd.f32 %v1291, %v1422
  %1424 = vmatmul.bf16.gmra.mxu0 %v1339
  %v1425 = vpop.f32.mrf.mxu0
  %v1426 = vadd.f32 %v1291, %v1425
  %v1427 = vpop.f32.mrf.mxu0
  %v1428 = vadd.f32 %v1291, %v1427
  %1429 = vdwg.mxu0
  %v1430 = vmax.f32 %v1351, 0.0
  %v1431 = vmax.f32 %v1353, 0.0
  %v1432 = vmax.f32 %v1356, 0.0
  %v1433 = vmax.f32 %v1358, 0.0
  %v1434 = vmax.f32 %v1361, 0.0
  %v1435 = vmax.f32 %v1363, 0.0
  %v1436 = vmax.f32 %v1366, 0.0
  %v1437 = vmax.f32 %v1368, 0.0
  %v1438 = vmax.f32 %v1371, 0.0
  %v1439 = vmax.f32 %v1373, 0.0
  %v1440 = vmax.f32 %v1376, 0.0
  %v1441 = vmax.f32 %v1378, 0.0
  %v1442 = vmax.f32 %v1381, 0.0
  %v1443 = vmax.f32 %v1383, 0.0
  %v1444 = vmax.f32 %v1386, 0.0
  %v1445 = vmax.f32 %v1388, 0.0
  %v1446 = vmax.f32 %v1391, 0.0
  %v1447 = vmax.f32 %v1393, 0.0
  %v1448 = vmax.f32 %v1396, 0.0
  %v1449 = vmax.f32 %v1398, 0.0
  %v1450 = vmax.f32 %v1401, 0.0
  %v1451 = vmax.f32 %v1403, 0.0
  %v1452 = vmax.f32 %v1406, 0.0
  %v1453 = vmax.f32 %v1408, 0.0
  %v1454 = vmax.f32 %v1411, 0.0
  %v1455 = vmax.f32 %v1413, 0.0
  %v1456 = vmax.f32 %v1416, 0.0
  %v1457 = vmax.f32 %v1418, 0.0
  %v1458 = vmax.f32 %v1421, 0.0
  %v1459 = vmax.f32 %v1423, 0.0
  %v1460 = vmax.f32 %v1426, 0.0
  %v1461 = vmax.f32 %v1428, 0.0
  %v1462 = vpack.c.bf16 %v1431, %v1430
  %v1463 = vpack.c.bf16 %v1433, %v1432
  %v1464 = vpack.c.bf16 %v1435, %v1434
  %v1465 = vpack.c.bf16 %v1437, %v1436
  %v1466 = vpack.c.bf16 %v1439, %v1438
  %v1467 = vpack.c.bf16 %v1441, %v1440
  %v1468 = vpack.c.bf16 %v1443, %v1442
  %v1469 = vpack.c.bf16 %v1445, %v1444
  %v1470 = vpack.c.bf16 %v1447, %v1446
  %v1471 = vpack.c.bf16 %v1449, %v1448
  %v1472 = vpack.c.bf16 %v1451, %v1450
  %v1473 = vpack.c.bf16 %v1453, %v1452
  %v1474 = vpack.c.bf16 %v1455, %v1454
  %v1475 = vpack.c.bf16 %v1457, %v1456
  %v1476 = vpack.c.bf16 %v1459, %v1458
  %v1477 = vpack.c.bf16 %v1461, %v1460
  %v1478 = vpack.c.bf16 %v1090, %v1089
  %v1479 = vpack.c.bf16 %v1092, %v1091
  %v1481 = vperm.slane %v1093, 0
  %v1484 = vsel %vm339, %v1462, 0
  %v1487 = vsel %vm339, %v1463, 0
  %v1490 = vsel %vm339, %v1464, 0
  %v1493 = vsel %vm339, %v1465, 0
  %v1496 = vsel %vm339, %v1466, 0
  %v1499 = vsel %vm339, %v1467, 0
  %v1502 = vsel %vm339, %v1468, 0
  %v1505 = vsel %vm339, %v1469, 0
  %v1508 = vsel %vm339, %v1470, 0
  %v1511 = vsel %vm339, %v1471, 0
  %v1514 = vsel %vm339, %v1472, 0
  %v1517 = vsel %vm339, %v1473, 0
  %v1520 = vsel %vm339, %v1474, 0
  %v1523 = vsel %vm339, %v1475, 0
  %v1526 = vsel %vm339, %v1476, 0
  %v1529 = vsel %vm339, %v1477, 0
  %1531 = vmatpush.bf16.msra.mxu0 0
  %1532 = vmatpush.bf16.msra.mxu0 0
  %1533 = vmatpush.bf16.msra.mxu0 0
  %1534 = vmatpush.bf16.msra.mxu0 0
  %1535 = vmatpush.bf16.msra.mxu0 0
  %1536 = vmatpush.bf16.msra.mxu0 0
  %1537 = vmatpush.bf16.msra.mxu0 %v1479
  %1538 = vmatpush.bf16.msra.mxu0 %v1478
  %1539 = vmatmul.bf16.gmra.mxu0 %v1484
  %v1540 = vpop.f32.mrf.mxu0
  %v1541 = vadd.f32 %v1481, %v1540
  %v1542 = vpop.f32.mrf.mxu0
  %v1543 = vadd.f32 %v1481, %v1542
  %1544 = vmatmul.bf16.gmra.mxu0 %v1487
  %v1545 = vpop.f32.mrf.mxu0
  %v1546 = vadd.f32 %v1481, %v1545
  %v1547 = vpop.f32.mrf.mxu0
  %v1548 = vadd.f32 %v1481, %v1547
  %1549 = vmatmul.bf16.gmra.mxu0 %v1490
  %v1550 = vpop.f32.mrf.mxu0
  %v1551 = vadd.f32 %v1481, %v1550
  %v1552 = vpop.f32.mrf.mxu0
  %v1553 = vadd.f32 %v1481, %v1552
  %1554 = vmatmul.bf16.gmra.mxu0 %v1493
  %v1555 = vpop.f32.mrf.mxu0
  %v1556 = vadd.f32 %v1481, %v1555
  %v1557 = vpop.f32.mrf.mxu0
  %v1558 = vadd.f32 %v1481, %v1557
  %1559 = vmatmul.bf16.gmra.mxu0 %v1496
  %v1560 = vpop.f32.mrf.mxu0
  %v1561 = vadd.f32 %v1481, %v1560
  %v1562 = vpop.f32.mrf.mxu0
  %v1563 = vadd.f32 %v1481, %v1562
  %1564 = vmatmul.bf16.gmra.mxu0 %v1499
  %v1565 = vpop.f32.mrf.mxu0
  %v1566 = vadd.f32 %v1481, %v1565
  %v1567 = vpop.f32.mrf.mxu0
  %v1568 = vadd.f32 %v1481, %v1567
  %1569 = vmatmul.bf16.gmra.mxu0 %v1502
  %v1570 = vpop.f32.mrf.mxu0
  %v1571 = vadd.f32 %v1481, %v1570
  %v1572 = vpop.f32.mrf.mxu0
  %v1573 = vadd.f32 %v1481, %v1572
  %1574 = vmatmul.bf16.gmra.mxu0 %v1505
  %v1575 = vpop.f32.mrf.mxu0
  %v1576 = vadd.f32 %v1481, %v1575
  %v1577 = vpop.f32.mrf.mxu0
  %v1578 = vadd.f32 %v1481, %v1577
  %1579 = vmatmul.bf16.gmra.mxu0 %v1508
  %v1580 = vpop.f32.mrf.mxu0
  %v1581 = vadd.f32 %v1481, %v1580
  %v1582 = vpop.f32.mrf.mxu0
  %v1583 = vadd.f32 %v1481, %v1582
  %1584 = vmatmul.bf16.gmra.mxu0 %v1511
  %v1585 = vpop.f32.mrf.mxu0
  %v1586 = vadd.f32 %v1481, %v1585
  %v1587 = vpop.f32.mrf.mxu0
  %v1588 = vadd.f32 %v1481, %v1587
  %1589 = vmatmul.bf16.gmra.mxu0 %v1514
  %v1590 = vpop.f32.mrf.mxu0
  %v1591 = vadd.f32 %v1481, %v1590
  %v1592 = vpop.f32.mrf.mxu0
  %v1593 = vadd.f32 %v1481, %v1592
  %1594 = vmatmul.bf16.gmra.mxu0 %v1517
  %v1595 = vpop.f32.mrf.mxu0
  %v1596 = vadd.f32 %v1481, %v1595
  %v1597 = vpop.f32.mrf.mxu0
  %v1598 = vadd.f32 %v1481, %v1597
  %1599 = vmatmul.bf16.gmra.mxu0 %v1520
  %v1600 = vpop.f32.mrf.mxu0
  %v1601 = vadd.f32 %v1481, %v1600
  %v1602 = vpop.f32.mrf.mxu0
  %v1603 = vadd.f32 %v1481, %v1602
  %1604 = vmatmul.bf16.gmra.mxu0 %v1523
  %v1605 = vpop.f32.mrf.mxu0
  %v1606 = vadd.f32 %v1481, %v1605
  %v1607 = vpop.f32.mrf.mxu0
  %v1608 = vadd.f32 %v1481, %v1607
  %1609 = vmatmul.bf16.gmra.mxu0 %v1526
  %v1610 = vpop.f32.mrf.mxu0
  %v1611 = vadd.f32 %v1481, %v1610
  %v1612 = vpop.f32.mrf.mxu0
  %v1613 = vadd.f32 %v1481, %v1612
  %1614 = vmatmul.bf16.gmra.mxu0 %v1529
  %v1615 = vpop.f32.mrf.mxu0
  %v1616 = vadd.f32 %v1481, %v1615
  %v1617 = vpop.f32.mrf.mxu0
  %v1618 = vadd.f32 %v1481, %v1617
  %1619 = vdwg.mxu0
  %v1620 = vadd.f32 %v1541, %v860
  %v1621 = vadd.f32 %v1543, %v865
  %v1622 = vadd.f32 %v1546, %v870
  %v1623 = vadd.f32 %v1548, %v875
  %v1624 = vadd.f32 %v1551, %v880
  %v1625 = vadd.f32 %v1553, %v885
  %v1626 = vadd.f32 %v1556, %v890
  %v1627 = vadd.f32 %v1558, %v895
  %v1628 = vadd.f32 %v1561, %v900
  %v1629 = vadd.f32 %v1563, %v905
  %v1630 = vadd.f32 %v1566, %v910
  %v1631 = vadd.f32 %v1568, %v915
  %v1632 = vadd.f32 %v1571, %v920
  %v1633 = vadd.f32 %v1573, %v925
  %v1634 = vadd.f32 %v1576, %v930
  %v1635 = vadd.f32 %v1578, %v935
  %v1636 = vadd.f32 %v1581, %v940
  %v1637 = vadd.f32 %v1583, %v945
  %v1638 = vadd.f32 %v1586, %v950
  %v1639 = vadd.f32 %v1588, %v955
  %v1640 = vadd.f32 %v1591, %v960
  %v1641 = vadd.f32 %v1593, %v965
  %v1642 = vadd.f32 %v1596, %v970
  %v1643 = vadd.f32 %v1598, %v975
  %v1644 = vadd.f32 %v1601, %v980
  %v1645 = vadd.f32 %v1603, %v985
  %v1646 = vadd.f32 %v1606, %v990
  %v1647 = vadd.f32 %v1608, %v995
  %v1648 = vadd.f32 %v1611, %v1000
  %v1649 = vadd.f32 %v1613, %v1005
  %v1650 = vadd.f32 %v1616, %v1010
  %v1651 = vadd.f32 %v1618, %v1015
  %v1652 = vmax.f32 %v1620, %v1636
  %v1653 = vmax.f32 %v1621, %v1637
  %v1654 = vmax.f32 %v1622, %v1638
  %v1655 = vmax.f32 %v1623, %v1639
  %v1656 = vmax.f32 %v1624, %v1640
  %v1657 = vmax.f32 %v1625, %v1641
  %v1658 = vmax.f32 %v1626, %v1642
  %v1659 = vmax.f32 %v1627, %v1643
  %v1660 = vmax.f32 %v1628, %v1644
  %v1661 = vmax.f32 %v1629, %v1645
  %v1662 = vmax.f32 %v1630, %v1646
  %v1663 = vmax.f32 %v1631, %v1647
  %v1664 = vmax.f32 %v1632, %v1648
  %v1665 = vmax.f32 %v1633, %v1649
  %v1666 = vmax.f32 %v1634, %v1650
  %v1667 = vmax.f32 %v1635, %v1651
  %v1668 = vmax.f32 %v1652, %v1660
  %v1669 = vmax.f32 %v1653, %v1661
  %v1670 = vmax.f32 %v1654, %v1662
  %v1671 = vmax.f32 %v1655, %v1663
  %v1672 = vmax.f32 %v1656, %v1664
  %v1673 = vmax.f32 %v1657, %v1665
  %v1674 = vmax.f32 %v1658, %v1666
  %v1675 = vmax.f32 %v1659, %v1667
  %v1676 = vmax.f32 %v1668, %v1672
  %v1677 = vmax.f32 %v1669, %v1673
  %v1678 = vmax.f32 %v1670, %v1674
  %v1679 = vmax.f32 %v1671, %v1675
  %v1680 = vmax.f32 %v1676, %v1678
  %v1681 = vmax.f32 %v1677, %v1679
  %v1682 = vmax.f32 %v1680, 0.0
  %v1683 = vmax.f32 %v1681, 0.0
  %v1684 = vld [vmem:[%s19] sm:$0xff]
  %v1685 = vpack.c.bf16 %v1683, %v1682
  %v1686 = vpack.c.bf16 %v1684, %v1684
  %v1687 = vld [vmem:[%s20] sm:$0x1]
  %v1689 = vperm.slane %v1687, 0
  %v1692 = vsel %vm204, %v1685, 0
  %vm1694 = vcmask 1043456
  %v1696 = vsel %vm1694, %v1686, 0
  %1698 = vmatpush.bf16.msra.mxu0 0
  %1699 = vmatpush.bf16.msra.mxu0 0
  %1700 = vmatpush.bf16.msra.mxu0 0
  %1701 = vmatpush.bf16.msra.mxu0 0
  %1702 = vmatpush.bf16.msra.mxu0 0
  %1703 = vmatpush.bf16.msra.mxu0 0
  %1704 = vmatpush.bf16.msra.mxu0 0
  %1705 = vmatpush.bf16.msra.mxu0 %v1696
  %1706 = vmatmul.bf16.gmra.mxu0 %v1692
  %v1707 = vpop.f32.mrf.mxu0
  %v1708 = vadd.f32 %v1689, %v1707
  %v1709 = vpop.f32.mrf.mxu0
  %v1710 = vadd.f32 %v1689, %v1709
  %1711 = vdwg.mxu0
  %v1712 = vmax.f32 %v1708, 0.0
  %v1713 = vmax.f32 %v1710, 0.0
  %v1714 = vld [vmem:[%s21] sm:$0xff]
  %v1715 = vld [vmem:[%s21 + $0x8] sm:$0xff]
  %v1716 = vld [vmem:[%s21 + $0x10] sm:$0xff]
  %v1717 = vld [vmem:[%s21 + $0x18] sm:$0xff]
  %v1718 = vld [vmem:[%s21 + $0x20] sm:$0xff]
  %v1719 = vld [vmem:[%s21 + $0x28] sm:$0xff]
  %v1720 = vld [vmem:[%s21 + $0x30] sm:$0xff]
  %v1721 = vld [vmem:[%s21 + $0x38] sm:$0xff]
  %v1722 = vld [vmem:[%s21 + $0x40] sm:$0xff]
  %v1723 = vld [vmem:[%s21 + $0x48] sm:$0xff]
  %v1724 = vld [vmem:[%s21 + $0x50] sm:$0xff]
  %v1725 = vld [vmem:[%s21 + $0x58] sm:$0xff]
  %v1726 = vld [vmem:[%s21 + $0x60] sm:$0xff]
  %v1727 = vld [vmem:[%s21 + $0x68] sm:$0xff]
  %v1728 = vld [vmem:[%s21 + $0x70] sm:$0xff]
  %v1729 = vld [vmem:[%s21 + $0x78] sm:$0xff]
  %v1730 = vpack.c.bf16 %v1713, %v1712
  %v1731 = vpack.c.bf16 %v1715, %v1714
  %v1732 = vpack.c.bf16 %v1717, %v1716
  %v1733 = vpack.c.bf16 %v1719, %v1718
  %v1734 = vpack.c.bf16 %v1721, %v1720
  %v1735 = vpack.c.bf16 %v1723, %v1722
  %v1736 = vpack.c.bf16 %v1725, %v1724
  %v1737 = vpack.c.bf16 %v1727, %v1726
  %v1738 = vpack.c.bf16 %v1729, %v1728
  %v1739 = vld [vmem:[%s22] sm:$0x1]
  %v1741 = vperm.slane %v1739, 0
  %1743 = vmatpush.bf16.msra.mxu0 %v1738
  %1744 = vmatpush.bf16.msra.mxu0 %v1737
  %1745 = vmatpush.bf16.msra.mxu0 %v1736
  %1746 = vmatpush.bf16.msra.mxu0 %v1735
  %1747 = vmatpush.bf16.msra.mxu0 %v1734
  %1748 = vmatpush.bf16.msra.mxu0 %v1733
  %1749 = vmatpush.bf16.msra.mxu0 %v1732
  %1750 = vmatpush.bf16.msra.mxu0 %v1731
  %1751 = vmatmul.bf16.gmra.mxu0 %v1730
  %v1752 = vpop.f32.mrf.mxu0
  %v1753 = vadd.f32 %v1741, %v1752
  %v1754 = vpop.f32.mrf.mxu0
  %v1755 = vadd.f32 %v1741, %v1754
  %1756 = vdwg.mxu0
  %v1757 = vmax.f32 %v1753, 0.0
  %v1758 = vmax.f32 %v1755, 0.0
  %v1759 = vld [vmem:[%s23] sm:$0xff]
  %v1760 = vld [vmem:[%s23 + $0x8] sm:$0xff]
  %v1761 = vld [vmem:[%s23 + $0x10] sm:$0xff]
  %v1762 = vld [vmem:[%s23 + $0x18] sm:$0xff]
  %v1763 = vld [vmem:[%s23 + $0x20] sm:$0xff]
  %v1764 = vld [vmem:[%s23 + $0x28] sm:$0xff]
  %v1765 = vld [vmem:[%s23 + $0x30] sm:$0xff]
  %v1766 = vld [vmem:[%s23 + $0x38] sm:$0xff]
  %v1767 = vld [vmem:[%s23 + $0x40] sm:$0xff]
  %v1768 = vld [vmem:[%s23 + $0x48] sm:$0xff]
  %v1769 = vld [vmem:[%s23 + $0x50] sm:$0xff]
  %v1770 = vld [vmem:[%s23 + $0x58] sm:$0xff]
  %v1771 = vld [vmem:[%s23 + $0x60] sm:$0xff]
  %v1772 = vld [vmem:[%s23 + $0x68] sm:$0xff]
  %v1773 = vld [vmem:[%s23 + $0x70] sm:$0xff]
  %v1774 = vld [vmem:[%s23 + $0x78] sm:$0xff]
  %v1775 = vpack.c.bf16 %v1758, %v1757
  %v1776 = vpack.c.bf16 %v1760, %v1759
  %v1777 = vpack.c.bf16 %v1762, %v1761
  %v1778 = vpack.c.bf16 %v1764, %v1763
  %v1779 = vpack.c.bf16 %v1766, %v1765
  %v1780 = vpack.c.bf16 %v1768, %v1767
  %v1781 = vpack.c.bf16 %v1770, %v1769
  %v1782 = vpack.c.bf16 %v1772, %v1771
  %v1783 = vpack.c.bf16 %v1774, %v1773
  %v1784 = vld [vmem:[#allocation2] sm:$0x1]
  %v1786 = vperm.slane %v1784, 0
  %1788 = vmatpush.bf16.msra.mxu0 %v1783
  %1789 = vmatpush.bf16.msra.mxu0 %v1782
  %1790 = vmatpush.bf16.msra.mxu0 %v1781
  %1791 = vmatpush.bf16.msra.mxu0 %v1780
  %1792 = vmatpush.bf16.msra.mxu0 %v1779
  %1793 = vmatpush.bf16.msra.mxu0 %v1778
  %1794 = vmatpush.bf16.msra.mxu0 %v1777
  %1795 = vmatpush.bf16.msra.mxu0 %v1776
  %1796 = vmatmul.bf16.gmra.mxu0 %v1775
  %v1797 = vpop.f32.mrf.mxu0
  %v1798 = vadd.f32 %v1786, %v1797
  %v1799 = vpop.f32.mrf.mxu0
  %v1800 = vadd.f32 %v1786, %v1799
  %1801 = vdwg.mxu0
  %vm1802 = vcmask 7168
  %1803 = vst.msk [vmem:[%s25] sm:$0xff] %vm1802, %v1798
  %1804 = vst.msk [vmem:[%s25 + $0x8] sm:$0xff] %vm1802, %v1800
  // Predicated region
  $region102: #{just_conv_net_forward.1} parent=0 // pred_check
    _
  $region103: #{just_conv_net_forward.1} parent=0 // pred_check_branch
    %1806 = sbr.rel (0) target = $region105
  $region104: #{just_conv_net_forward.1} parent=0 // pred_region
    _
  $region105: #{just_conv_net_forward.1} parent=0 // pred_fallthru
    _
  // Predicated region
  $region106: #{just_conv_net_forward.1} parent=0 // pred_check
    _
  $region107: #{just_conv_net_forward.1} parent=0 // pred_check_branch
    %1808 = sbr.rel (0) target = $region109
  $region108: #{just_conv_net_forward.1} parent=0 // pred_region
    _
  $region109: #{just_conv_net_forward.1} parent=0 // pred_fallthru
    _

</llo_original>
